<compile_context>
chip_gen: v5e
topology: v5e:2x2
jax: 0.10.0
libtpu: 0.0.40
codegen_flags: <defaults>
</compile_context>

<pallas_src>
import math
import functools

import jax
import jax.numpy as jnp
from jax import lax
from jax.experimental import pallas as pl
from jax.experimental.pallas import tpu as pltpu


LANE = 128
SUBLANE = 8


def _round_up(x, m):
    return (x + m - 1) // m * m


# -----------------------------------------------------------------------------
# Kernel 1: LSTM recurrence.  One invocation runs all T steps; emits h_t
# time-major into a (T, Bp, Hp) output.  Fused gate GEMM: [x, h] @ W_cat + b.
# -----------------------------------------------------------------------------
def lstm_recurrence_kernel(emb_ref, h0_ref, c0_ref, w_ref, b_ref, hs_ref,
                           *, hidden_p, seq_len, unroll):
    Hp = hidden_p
    w = w_ref[...]            # (Ep+Hp, 4Hp) bf16 — loaded once, resident for all steps
    b = b_ref[...]            # (1, 4Hp) f32

    def step(t, carry):
        h, c = carry                                   # f32 (Bp, Hp)
        x = emb_ref[t]                                 # f32 (Bp, Ep)
        xh = jnp.concatenate([x, h], axis=-1).astype(w.dtype)      # bf16 for MXU
        gates = jnp.dot(xh, w, preferred_element_type=jnp.float32) + b
        # Lane-aligned gate slices (Hp is a multiple of 128). PyTorch order i,f,g,o.
        i_g = jax.nn.sigmoid(gates[:, 0 * Hp:1 * Hp])
        f_g = jax.nn.sigmoid(gates[:, 1 * Hp:2 * Hp])
        g_g = jnp.tanh(gates[:, 2 * Hp:3 * Hp])
        o_g = jax.nn.sigmoid(gates[:, 3 * Hp:4 * Hp])
        c_new = f_g * c + i_g * g_g
        h_new = o_g * jnp.tanh(c_new)
        hs_ref[t] = h_new                              # time-major hidden-state store
        return (h_new, c_new)

    lax.fori_loop(0, seq_len, step, (h0_ref[...], c0_ref[...]), unroll=unroll)


# -----------------------------------------------------------------------------
# Kernel 2: batched output projection + log-softmax over (B*T) rows.
# Independent of the recurrence -> grid axis marked "parallel".
# -----------------------------------------------------------------------------
def proj_logsoftmax_kernel(h_ref, w_ref, b_ref, out_ref):
    w = w_ref[...]                                     # (Hp, Vp) bf16
    h = h_ref[...].astype(w.dtype)                     # (TM, Hp) bf16
    logits = jnp.dot(h, w, preferred_element_type=jnp.float32) + b_ref[...]
    m = jnp.max(logits, axis=-1, keepdims=True)
    z = logits - m
    lse = jnp.log(jnp.sum(jnp.exp(z), axis=-1, keepdims=True))
    out_ref[...] = (z - lse).astype(out_ref.dtype)


# -----------------------------------------------------------------------------
# Parameter packing / padding (done once, outside the forward pass).
# -----------------------------------------------------------------------------
def pack_params(params, mm_dtype=jnp.bfloat16):
    emb_tbl, w_ih, w_hh, b_ih, b_hh, w_out, b_out = params
    V, E = emb_tbl.shape
    H = w_hh.shape[1]
    Ep, Hp, Vp = _round_up(E, LANE), _round_up(H, LANE), _round_up(V, LANE)

    # Embedding table: pad feature dim only (rows are indexed by real token ids).
    emb_p = jnp.zeros((V, Ep), jnp.float32).at[:, :E].set(emb_tbl)

    # Fused gate weight [W_ih^T ; W_hh^T] -> (Ep+Hp, 4*Hp).  Each gate's real
    # columns are placed at Hp-aligned offsets so in-kernel slices are lane
    # aligned; padded rows/cols stay zero so padding never leaks into real math.
    w_cat = jnp.zeros((Ep + Hp, 4 * Hp), jnp.float32)
    b_cat = jnp.zeros((1, 4 * Hp), jnp.float32)
    wihT, whhT = w_ih.T, w_hh.T
    bsum = b_ih + b_hh
    for k in range(4):
        w_cat = w_cat.at[:E, k * Hp:k * Hp + H].set(wihT[:, k * H:(k + 1) * H])
        w_cat = w_cat.at[Ep:Ep + H, k * Hp:k * Hp + H].set(whhT[:, k * H:(k + 1) * H])
        b_cat = b_cat.at[0, k * Hp:k * Hp + H].set(bsum[k * H:(k + 1) * H])

    # Output projection: padded vocab columns get bias -1e30 so exp() of those
    # logits is exactly 0 and the log-softmax over real columns is unaffected.
    w_out_p = jnp.zeros((Hp, Vp), jnp.float32).at[:H, :V].set(w_out.T)
    b_out_p = jnp.full((1, Vp), -1e30, jnp.float32).at[0, :V].set(b_out)

    return dict(
        emb=emb_p,
        w_cat=w_cat.astype(mm_dtype),
        b_cat=b_cat,
        w_out=w_out_p.astype(mm_dtype),
        b_out=b_out_p,
        dims=(V, E, H, Ep, Hp, Vp),
    )


# -----------------------------------------------------------------------------
# Forward pass: mirrors LSTMGenerator.forward(inp, hidden) -> pred (B*T, V)
# -----------------------------------------------------------------------------
def lstm_generator_forward(inp, hidden, packed):
    V, E, H, Ep, Hp, Vp = packed["dims"]
    h0, c0 = hidden                                    # each (1, B, H)

    if inp.ndim == 1:                                  # matches `emb.unsqueeze(1)`
        inp = inp[:, None]
    B, T = inp.shape
    Bp = _round_up(B, SUBLANE)

    # --- glue (plain JAX): embedding gather + batch/feature padding ----------
    # TODO(synk): fold the embedding gather into kernel 1 via scalar prefetch
    # (PrefetchScalarGridSpec + pl.Element index map) for non-toy E / T.
    emb = jnp.take(packed["emb"], inp, axis=0)         # (B, T, Ep)
    emb_tm = jnp.zeros((T, Bp, Ep), jnp.float32).at[:, :B, :].set(
        jnp.transpose(emb, (1, 0, 2)))                 # time-major (T, Bp, Ep)

    h0_p = jnp.zeros((Bp, Hp), jnp.float32).at[:B, :H].set(h0[0])
    c0_p = jnp.zeros((Bp, Hp), jnp.float32).at[:B, :H].set(c0[0])

    # --- kernel 1: the whole recurrence in one invocation ---------------------
    rec_kernel = functools.partial(
        lstm_recurrence_kernel, hidden_p=Hp, seq_len=T, unroll=bool(T <= 16))

    hs_tm = pl.pallas_call(
        rec_kernel,
        out_shape=jax.ShapeDtypeStruct((T, Bp, Hp), jnp.float32),
        grid_spec=pltpu.PrefetchScalarGridSpec(
            num_scalar_prefetch=0,
            grid=(1,),
            in_specs=[
                pl.BlockSpec((T, Bp, Ep), lambda i: (0, 0, 0)),      # all emb steps
                pl.BlockSpec((Bp, Hp), lambda i: (0, 0)),            # h0
                pl.BlockSpec((Bp, Hp), lambda i: (0, 0)),            # c0
                pl.BlockSpec((Ep + Hp, 4 * Hp), lambda i: (0, 0)),   # fused W_cat
                pl.BlockSpec((1, 4 * Hp), lambda i: (0, 0)),         # fused bias
            ],
            out_specs=pl.BlockSpec((T, Bp, Hp), lambda i: (0, 0, 0)),
        ),
        compiler_params=pltpu.CompilerParams(
            dimension_semantics=("arbitrary",),        # recurrence is sequential
            vmem_limit_bytes=48 * 1024 * 1024,
        ),
    )(emb_tm, h0_p, c0_p, packed["w_cat"], packed["b_cat"])

    # --- kernel 2: batched projection + log-softmax (off the serial path) -----
    # Transpose only the small H-sized hidden tensor to batch-major row order
    # (matches out.contiguous().view(-1, H)); the V-sized output is written
    # directly in its final (B*T, V) order by the kernel.
    h_rows = jnp.transpose(hs_tm[:, :B, :], (1, 0, 2)).reshape(B * T, Hp)
    N = B * T
    TM = min(128, _round_up(N, SUBLANE))
    Np = _round_up(N, TM)
    if Np != N:
        h_rows = jnp.zeros((Np, Hp), jnp.float32).at[:N].set(h_rows)

    pred_p = pl.pallas_call(
        proj_logsoftmax_kernel,
        out_shape=jax.ShapeDtypeStruct((Np, Vp), jnp.float32),
        grid_spec=pltpu.PrefetchScalarGridSpec(
            num_scalar_prefetch=0,
            grid=(Np // TM,),
            in_specs=[
                pl.BlockSpec((TM, Hp), lambda i: (i, 0)),            # hidden rows
                pl.BlockSpec((Hp, Vp), lambda i: (0, 0)),            # W_out^T
                pl.BlockSpec((1, Vp), lambda i: (0, 0)),             # b_out
            ],
            out_specs=pl.BlockSpec((TM, Vp), lambda i: (i, 0)),
        ),
        compiler_params=pltpu.CompilerParams(
            dimension_semantics=("parallel",),         # row tiles are independent
            vmem_limit_bytes=48 * 1024 * 1024,
        ),
    )(h_rows, packed["w_out"], packed["b_out"])

    return pred_p[:N, :V]                              # (B*T, V) log-probs


# -----------------------------------------------------------------------------
# Pure-JAX reference (f32) of the PyTorch forward, for a correctness check.
# -----------------------------------------------------------------------------
def lstm_generator_reference(inp, hidden, params):
    emb_tbl, w_ih, w_hh, b_ih, b_hh, w_out, b_out = params
    h, c = hidden[0][0], hidden[1][0]
    if inp.ndim == 1:
        inp = inp[:, None]
    B, T = inp.shape
    H = h.shape[-1]
    emb = jnp.take(emb_tbl, inp, axis=0)
    outs = []
    for t in range(T):
        x = emb[:, t, :]
        gates = x @ w_ih.T + h @ w_hh.T + b_ih + b_hh
        i_g = jax.nn.sigmoid(gates[:, 0 * H:1 * H])
        f_g = jax.nn.sigmoid(gates[:, 1 * H:2 * H])
        g_g = jnp.tanh(gates[:, 2 * H:3 * H])
        o_g = jax.nn.sigmoid(gates[:, 3 * H:4 * H])
        c = f_g * c + i_g * g_g
        h = o_g * jnp.tanh(c)
        outs.append(h)
    out = jnp.stack(outs, axis=1).reshape(B * T, H)
    logits = out @ w_out.T + b_out
    return jax.nn.log_softmax(logits, axis=-1)


def init_params(key, embedding_dim, hidden_dim, vocab_size):
    """Mirrors init_params() with cfg.gen_init == 'normal': N(0, 1/sqrt(shape[0]))."""
    E, H, V = embedding_dim, hidden_dim, vocab_size
    ks = jax.random.split(key, 7)
    emb_tbl = jax.random.normal(ks[0], (V, E), jnp.float32) / math.sqrt(V)
    w_ih = jax.random.normal(ks[1], (4 * H, E), jnp.float32) / math.sqrt(4 * H)
    w_hh = jax.random.normal(ks[2], (4 * H, H), jnp.float32) / math.sqrt(4 * H)
    b_ih = jax.random.normal(ks[3], (4 * H,), jnp.float32) / math.sqrt(4 * H)
    b_hh = jax.random.normal(ks[4], (4 * H,), jnp.float32) / math.sqrt(4 * H)
    w_out = jax.random.normal(ks[5], (V, H), jnp.float32) / math.sqrt(V)
    b_out = jax.random.normal(ks[6], (V,), jnp.float32) / math.sqrt(V)
    return (emb_tbl, w_ih, w_hh, b_ih, b_hh, w_out, b_out)


if __name__ == "__main__":
    # Small shapes consistent with the module: gen_embed_dim=32, gen_hidden_dim=32
    B, T = 4, 8
    E, H, V = 32, 32, 32

    key = jax.random.PRNGKey(0)
    k_tok, k_par = jax.random.split(key)

    params = init_params(k_par, E, H, V)
    packed = pack_params(params)

    inp = jax.random.randint(k_tok, (B, T), 0, V, dtype=jnp.int32)   # batch_size * seq_len
    h0 = jnp.zeros((1, B, H), jnp.float32)                           # init_hidden()
    c0 = jnp.zeros((1, B, H), jnp.float32)

    pred = lstm_generator_forward(inp, (h0, c0), packed)
    pred = jax.block_until_ready(pred)

    assert pred.shape == (B * T, V), pred.shape
    # log-softmax rows should sum to 1 after exp
    assert jnp.allclose(jnp.sum(jnp.exp(pred), axis=-1), 1.0, atol=1e-4)
    # match the pure-JAX f32 reference (bf16 matmuls -> generous tolerance)
    ref = lstm_generator_reference(inp, (h0, c0), params)
    assert jnp.allclose(pred, ref, atol=5e-2), float(jnp.max(jnp.abs(pred - ref)))

    print("KERNEL_OK")
</pallas_src>

<mosaic_0001>
module attributes {stable_mosaic.version = 11 : i64} {
  func.func @lstm_recurrence_kernel(%arg0: i32, %arg1: memref<8x8x128xf32, #tpu.memory_space<vmem>>, %arg2: memref<8x128xf32, #tpu.memory_space<vmem>>, %arg3: memref<8x128xf32, #tpu.memory_space<vmem>>, %arg4: memref<256x512xbf16, #tpu.memory_space<vmem>>, %arg5: memref<1x512xf32, #tpu.memory_space<vmem>>, %arg6: memref<8x8x128xf32, #tpu.memory_space<vmem>>) attributes {dimension_semantics = [#tpu.dimension_semantics<arbitrary>], iteration_bounds = array<i64: 1>, scalar_prefetch = 0 : i64, scratch_operands = 0 : i64, tpu.core_type = #tpu.core_type<tc>, window_params = [{pipeline_mode = #tpu.pipeline_mode<synchronous>, transform_indices = @transform_0, window_bounds = array<i64: 8, 8, 128>}, {pipeline_mode = #tpu.pipeline_mode<synchronous>, transform_indices = @transform_1, window_bounds = array<i64: 8, 128>}, {pipeline_mode = #tpu.pipeline_mode<synchronous>, transform_indices = @transform_2, window_bounds = array<i64: 8, 128>}, {pipeline_mode = #tpu.pipeline_mode<synchronous>, transform_indices = @transform_3, window_bounds = array<i64: 256, 512>}, {pipeline_mode = #tpu.pipeline_mode<synchronous>, transform_indices = @transform_4, window_bounds = array<i64: 1, 512>}, {pipeline_mode = #tpu.pipeline_mode<synchronous>, transform_indices = @transform_5, window_bounds = array<i64: 8, 8, 128>}]} {
    %c0 = arith.constant 0 : index
    %c0_0 = arith.constant 0 : index
    %0 = vector.load %arg4[%c0, %c0_0] : memref<256x512xbf16, #tpu.memory_space<vmem>>, vector<256x512xbf16>
    %c0_1 = arith.constant 0 : index
    %c0_2 = arith.constant 0 : index
    %1 = vector.load %arg5[%c0_1, %c0_2] : memref<1x512xf32, #tpu.memory_space<vmem>>, vector<1x512xf32>
    %c0_3 = arith.constant 0 : index
    %c0_4 = arith.constant 0 : index
    %2 = vector.load %arg2[%c0_3, %c0_4] : memref<8x128xf32, #tpu.memory_space<vmem>>, vector<8x128xf32>
    %c0_5 = arith.constant 0 : index
    %c0_6 = arith.constant 0 : index
    %3 = vector.load %arg3[%c0_5, %c0_6] : memref<8x128xf32, #tpu.memory_space<vmem>>, vector<8x128xf32>
    %c0_i32 = arith.constant 0 : i32
    %4 = arith.index_cast %c0_i32 : i32 to index
    %c0_7 = arith.constant 0 : index
    %c0_8 = arith.constant 0 : index
    %5 = vector.load %arg1[%4, %c0_7, %c0_8] : memref<8x8x128xf32, #tpu.memory_space<vmem>>, vector<1x8x128xf32>
    %6 = vector.shape_cast %5 : vector<1x8x128xf32> to vector<8x128xf32>
    %7 = tpu.concatenate %6, %2 in 1 : vector<8x128xf32>, vector<8x128xf32> -> vector<8x256xf32>
    %8 = arith.truncf %7 : vector<8x256xf32> to vector<8x256xbf16>
    %cst = arith.constant dense<0.000000e+00> : vector<8x512xf32>
    %9 = tpu.matmul %8, %0, %cst {dimension_numbers = #tpu.dot_dimension_numbers<[1], [0], [0], [1], [0, 0, 1, 1], [], []>} : vector<8x256xbf16>, vector<256x512xbf16>, vector<8x512xf32> -> vector<8x512xf32>
    %10 = vector.broadcast %1 : vector<1x512xf32> to vector<8x512xf32>
    %11 = arith.addf %9, %10 : vector<8x512xf32>
    %12 = vector.extract_strided_slice %11 {offsets = [0, 0], sizes = [8, 128], strides = [1, 1]} : vector<8x512xf32> to vector<8x128xf32>
    %13 = arith.negf %12 : vector<8x128xf32>
    %14 = math.exp %13 : vector<8x128xf32>
    %cst_9 = arith.constant 1.000000e+00 : f32
    %15 = vector.broadcast %cst_9 : f32 to vector<8x128xf32>
    %16 = arith.addf %15, %14 : vector<8x128xf32>
    %17 = arith.divf %15, %16 : vector<8x128xf32>
    %18 = vector.extract_strided_slice %11 {offsets = [0, 128], sizes = [8, 128], strides = [1, 1]} : vector<8x512xf32> to vector<8x128xf32>
    %19 = arith.negf %18 : vector<8x128xf32>
    %20 = math.exp %19 : vector<8x128xf32>
    %cst_10 = arith.constant 1.000000e+00 : f32
    %21 = vector.broadcast %cst_10 : f32 to vector<8x128xf32>
    %22 = arith.addf %21, %20 : vector<8x128xf32>
    %23 = arith.divf %21, %22 : vector<8x128xf32>
    %24 = vector.extract_strided_slice %11 {offsets = [0, 256], sizes = [8, 128], strides = [1, 1]} : vector<8x512xf32> to vector<8x128xf32>
    %25 = math.tanh %24 : vector<8x128xf32>
    %26 = vector.extract_strided_slice %11 {offsets = [0, 384], sizes = [8, 128], strides = [1, 1]} : vector<8x512xf32> to vector<8x128xf32>
    %27 = arith.negf %26 : vector<8x128xf32>
    %28 = math.exp %27 : vector<8x128xf32>
    %cst_11 = arith.constant 1.000000e+00 : f32
    %29 = vector.broadcast %cst_11 : f32 to vector<8x128xf32>
    %30 = arith.addf %29, %28 : vector<8x128xf32>
    %31 = arith.divf %29, %30 : vector<8x128xf32>
    %32 = arith.mulf %23, %3 : vector<8x128xf32>
    %33 = arith.mulf %17, %25 : vector<8x128xf32>
    %34 = arith.addf %32, %33 : vector<8x128xf32>
    %35 = math.tanh %34 : vector<8x128xf32>
    %36 = arith.mulf %31, %35 : vector<8x128xf32>
    %37 = arith.index_cast %c0_i32 : i32 to index
    %c0_12 = arith.constant 0 : index
    %c0_13 = arith.constant 0 : index
    %38 = vector.load %arg6[%37, %c0_12, %c0_13] : memref<8x8x128xf32, #tpu.memory_space<vmem>>, vector<1x8x128xf32>
    %39 = vector.shape_cast %38 : vector<1x8x128xf32> to vector<8x128xf32>
    %40 = vector.shape_cast %36 : vector<8x128xf32> to vector<1x8x128xf32>
    tpu.vector_store %arg6[%37, %c0_12, %c0_13], %40 {strides = array<i32>} : memref<8x8x128xf32, #tpu.memory_space<vmem>>, vector<1x8x128xf32>,
    %c1_i32 = arith.constant 1 : i32
    %41 = arith.index_cast %c1_i32 : i32 to index
    %c0_14 = arith.constant 0 : index
    %c0_15 = arith.constant 0 : index
    %42 = vector.load %arg1[%41, %c0_14, %c0_15] : memref<8x8x128xf32, #tpu.memory_space<vmem>>, vector<1x8x128xf32>
    %43 = vector.shape_cast %42 : vector<1x8x128xf32> to vector<8x128xf32>
    %44 = tpu.concatenate %43, %36 in 1 : vector<8x128xf32>, vector<8x128xf32> -> vector<8x256xf32>
    %45 = arith.truncf %44 : vector<8x256xf32> to vector<8x256xbf16>
    %cst_16 = arith.constant dense<0.000000e+00> : vector<8x512xf32>
    %46 = tpu.matmul %45, %0, %cst_16 {dimension_numbers = #tpu.dot_dimension_numbers<[1], [0], [0], [1], [0, 0, 1, 1], [], []>} : vector<8x256xbf16>, vector<256x512xbf16>, vector<8x512xf32> -> vector<8x512xf32>
    %47 = vector.broadcast %1 : vector<1x512xf32> to vector<8x512xf32>
    %48 = arith.addf %46, %47 : vector<8x512xf32>
    %49 = vector.extract_strided_slice %48 {offsets = [0, 0], sizes = [8, 128], strides = [1, 1]} : vector<8x512xf32> to vector<8x128xf32>
    %50 = arith.negf %49 : vector<8x128xf32>
    %51 = math.exp %50 : vector<8x128xf32>
    %cst_17 = arith.constant 1.000000e+00 : f32
    %52 = vector.broadcast %cst_17 : f32 to vector<8x128xf32>
    %53 = arith.addf %52, %51 : vector<8x128xf32>
    %54 = arith.divf %52, %53 : vector<8x128xf32>
    %55 = vector.extract_strided_slice %48 {offsets = [0, 128], sizes = [8, 128], strides = [1, 1]} : vector<8x512xf32> to vector<8x128xf32>
    %56 = arith.negf %55 : vector<8x128xf32>
    %57 = math.exp %56 : vector<8x128xf32>
    %cst_18 = arith.constant 1.000000e+00 : f32
    %58 = vector.broadcast %cst_18 : f32 to vector<8x128xf32>
    %59 = arith.addf %58, %57 : vector<8x128xf32>
    %60 = arith.divf %58, %59 : vector<8x128xf32>
    %61 = vector.extract_strided_slice %48 {offsets = [0, 256], sizes = [8, 128], strides = [1, 1]} : vector<8x512xf32> to vector<8x128xf32>
    %62 = math.tanh %61 : vector<8x128xf32>
    %63 = vector.extract_strided_slice %48 {offsets = [0, 384], sizes = [8, 128], strides = [1, 1]} : vector<8x512xf32> to vector<8x128xf32>
    %64 = arith.negf %63 : vector<8x128xf32>
    %65 = math.exp %64 : vector<8x128xf32>
    %cst_19 = arith.constant 1.000000e+00 : f32
    %66 = vector.broadcast %cst_19 : f32 to vector<8x128xf32>
    %67 = arith.addf %66, %65 : vector<8x128xf32>
    %68 = arith.divf %66, %67 : vector<8x128xf32>
    %69 = arith.mulf %60, %34 : vector<8x128xf32>
    %70 = arith.mulf %54, %62 : vector<8x128xf32>
    %71 = arith.addf %69, %70 : vector<8x128xf32>
    %72 = math.tanh %71 : vector<8x128xf32>
    %73 = arith.mulf %68, %72 : vector<8x128xf32>
    %74 = arith.index_cast %c1_i32 : i32 to index
    %c0_20 = arith.constant 0 : index
    %c0_21 = arith.constant 0 : index
    %75 = vector.load %arg6[%74, %c0_20, %c0_21] : memref<8x8x128xf32, #tpu.memory_space<vmem>>, vector<1x8x128xf32>
    %76 = vector.shape_cast %75 : vector<1x8x128xf32> to vector<8x128xf32>
    %77 = vector.shape_cast %73 : vector<8x128xf32> to vector<1x8x128xf32>
    tpu.vector_store %arg6[%74, %c0_20, %c0_21], %77 {strides = array<i32>} : memref<8x8x128xf32, #tpu.memory_space<vmem>>, vector<1x8x128xf32>,
    %c2_i32 = arith.constant 2 : i32
    %78 = arith.index_cast %c2_i32 : i32 to index
    %c0_22 = arith.constant 0 : index
    %c0_23 = arith.constant 0 : index
    %79 = vector.load %arg1[%78, %c0_22, %c0_23] : memref<8x8x128xf32, #tpu.memory_space<vmem>>, vector<1x8x128xf32>
    %80 = vector.shape_cast %79 : vector<1x8x128xf32> to vector<8x128xf32>
    %81 = tpu.concatenate %80, %73 in 1 : vector<8x128xf32>, vector<8x128xf32> -> vector<8x256xf32>
    %82 = arith.truncf %81 : vector<8x256xf32> to vector<8x256xbf16>
    %cst_24 = arith.constant dense<0.000000e+00> : vector<8x512xf32>
    %83 = tpu.matmul %82, %0, %cst_24 {dimension_numbers = #tpu.dot_dimension_numbers<[1], [0], [0], [1], [0, 0, 1, 1], [], []>} : vector<8x256xbf16>, vector<256x512xbf16>, vector<8x512xf32> -> vector<8x512xf32>
    %84 = vector.broadcast %1 : vector<1x512xf32> to vector<8x512xf32>
    %85 = arith.addf %83, %84 : vector<8x512xf32>
    %86 = vector.extract_strided_slice %85 {offsets = [0, 0], sizes = [8, 128], strides = [1, 1]} : vector<8x512xf32> to vector<8x128xf32>
    %87 = arith.negf %86 : vector<8x128xf32>
    %88 = math.exp %87 : vector<8x128xf32>
    %cst_25 = arith.constant 1.000000e+00 : f32
    %89 = vector.broadcast %cst_25 : f32 to vector<8x128xf32>
    %90 = arith.addf %89, %88 : vector<8x128xf32>
    %91 = arith.divf %89, %90 : vector<8x128xf32>
    %92 = vector.extract_strided_slice %85 {offsets = [0, 128], sizes = [8, 128], strides = [1, 1]} : vector<8x512xf32> to vector<8x128xf32>
    %93 = arith.negf %92 : vector<8x128xf32>
    %94 = math.exp %93 : vector<8x128xf32>
    %cst_26 = arith.constant 1.000000e+00 : f32
    %95 = vector.broadcast %cst_26 : f32 to vector<8x128xf32>
    %96 = arith.addf %95, %94 : vector<8x128xf32>
    %97 = arith.divf %95, %96 : vector<8x128xf32>
    %98 = vector.extract_strided_slice %85 {offsets = [0, 256], sizes = [8, 128], strides = [1, 1]} : vector<8x512xf32> to vector<8x128xf32>
    %99 = math.tanh %98 : vector<8x128xf32>
    %100 = vector.extract_strided_slice %85 {offsets = [0, 384], sizes = [8, 128], strides = [1, 1]} : vector<8x512xf32> to vector<8x128xf32>
    %101 = arith.negf %100 : vector<8x128xf32>
    %102 = math.exp %101 : vector<8x128xf32>
    %cst_27 = arith.constant 1.000000e+00 : f32
    %103 = vector.broadcast %cst_27 : f32 to vector<8x128xf32>
    %104 = arith.addf %103, %102 : vector<8x128xf32>
    %105 = arith.divf %103, %104 : vector<8x128xf32>
    %106 = arith.mulf %97, %71 : vector<8x128xf32>
    %107 = arith.mulf %91, %99 : vector<8x128xf32>
    %108 = arith.addf %106, %107 : vector<8x128xf32>
    %109 = math.tanh %108 : vector<8x128xf32>
    %110 = arith.mulf %105, %109 : vector<8x128xf32>
    %111 = arith.index_cast %c2_i32 : i32 to index
    %c0_28 = arith.constant 0 : index
    %c0_29 = arith.constant 0 : index
    %112 = vector.load %arg6[%111, %c0_28, %c0_29] : memref<8x8x128xf32, #tpu.memory_space<vmem>>, vector<1x8x128xf32>
    %113 = vector.shape_cast %112 : vector<1x8x128xf32> to vector<8x128xf32>
    %114 = vector.shape_cast %110 : vector<8x128xf32> to vector<1x8x128xf32>
    tpu.vector_store %arg6[%111, %c0_28, %c0_29], %114 {strides = array<i32>} : memref<8x8x128xf32, #tpu.memory_space<vmem>>, vector<1x8x128xf32>,
    %c3_i32 = arith.constant 3 : i32
    %115 = arith.index_cast %c3_i32 : i32 to index
    %c0_30 = arith.constant 0 : index
    %c0_31 = arith.constant 0 : index
    %116 = vector.load %arg1[%115, %c0_30, %c0_31] : memref<8x8x128xf32, #tpu.memory_space<vmem>>, vector<1x8x128xf32>
    %117 = vector.shape_cast %116 : vector<1x8x128xf32> to vector<8x128xf32>
    %118 = tpu.concatenate %117, %110 in 1 : vector<8x128xf32>, vector<8x128xf32> -> vector<8x256xf32>
    %119 = arith.truncf %118 : vector<8x256xf32> to vector<8x256xbf16>
    %cst_32 = arith.constant dense<0.000000e+00> : vector<8x512xf32>
    %120 = tpu.matmul %119, %0, %cst_32 {dimension_numbers = #tpu.dot_dimension_numbers<[1], [0], [0], [1], [0, 0, 1, 1], [], []>} : vector<8x256xbf16>, vector<256x512xbf16>, vector<8x512xf32> -> vector<8x512xf32>
    %121 = vector.broadcast %1 : vector<1x512xf32> to vector<8x512xf32>
    %122 = arith.addf %120, %121 : vector<8x512xf32>
    %123 = vector.extract_strided_slice %122 {offsets = [0, 0], sizes = [8, 128], strides = [1, 1]} : vector<8x512xf32> to vector<8x128xf32>
    %124 = arith.negf %123 : vector<8x128xf32>
    %125 = math.exp %124 : vector<8x128xf32>
    %cst_33 = arith.constant 1.000000e+00 : f32
    %126 = vector.broadcast %cst_33 : f32 to vector<8x128xf32>
    %127 = arith.addf %126, %125 : vector<8x128xf32>
    %128 = arith.divf %126, %127 : vector<8x128xf32>
    %129 = vector.extract_strided_slice %122 {offsets = [0, 128], sizes = [8, 128], strides = [1, 1]} : vector<8x512xf32> to vector<8x128xf32>
    %130 = arith.negf %129 : vector<8x128xf32>
    %131 = math.exp %130 : vector<8x128xf32>
    %cst_34 = arith.constant 1.000000e+00 : f32
    %132 = vector.broadcast %cst_34 : f32 to vector<8x128xf32>
    %133 = arith.addf %132, %131 : vector<8x128xf32>
    %134 = arith.divf %132, %133 : vector<8x128xf32>
    %135 = vector.extract_strided_slice %122 {offsets = [0, 256], sizes = [8, 128], strides = [1, 1]} : vector<8x512xf32> to vector<8x128xf32>
    %136 = math.tanh %135 : vector<8x128xf32>
    %137 = vector.extract_strided_slice %122 {offsets = [0, 384], sizes = [8, 128], strides = [1, 1]} : vector<8x512xf32> to vector<8x128xf32>
    %138 = arith.negf %137 : vector<8x128xf32>
    %139 = math.exp %138 : vector<8x128xf32>
    %cst_35 = arith.constant 1.000000e+00 : f32
    %140 = vector.broadcast %cst_35 : f32 to vector<8x128xf32>
    %141 = arith.addf %140, %139 : vector<8x128xf32>
    %142 = arith.divf %140, %141 : vector<8x128xf32>
    %143 = arith.mulf %134, %108 : vector<8x128xf32>
    %144 = arith.mulf %128, %136 : vector<8x128xf32>
    %145 = arith.addf %143, %144 : vector<8x128xf32>
    %146 = math.tanh %145 : vector<8x128xf32>
    %147 = arith.mulf %142, %146 : vector<8x128xf32>
    %148 = arith.index_cast %c3_i32 : i32 to index
    %c0_36 = arith.constant 0 : index
    %c0_37 = arith.constant 0 : index
    %149 = vector.load %arg6[%148, %c0_36, %c0_37] : memref<8x8x128xf32, #tpu.memory_space<vmem>>, vector<1x8x128xf32>
    %150 = vector.shape_cast %149 : vector<1x8x128xf32> to vector<8x128xf32>
    %151 = vector.shape_cast %147 : vector<8x128xf32> to vector<1x8x128xf32>
    tpu.vector_store %arg6[%148, %c0_36, %c0_37], %151 {strides = array<i32>} : memref<8x8x128xf32, #tpu.memory_space<vmem>>, vector<1x8x128xf32>,
    %c4_i32 = arith.constant 4 : i32
    %152 = arith.index_cast %c4_i32 : i32 to index
    %c0_38 = arith.constant 0 : index
    %c0_39 = arith.constant 0 : index
    %153 = vector.load %arg1[%152, %c0_38, %c0_39] : memref<8x8x128xf32, #tpu.memory_space<vmem>>, vector<1x8x128xf32>
    %154 = vector.shape_cast %153 : vector<1x8x128xf32> to vector<8x128xf32>
    %155 = tpu.concatenate %154, %147 in 1 : vector<8x128xf32>, vector<8x128xf32> -> vector<8x256xf32>
    %156 = arith.truncf %155 : vector<8x256xf32> to vector<8x256xbf16>
    %cst_40 = arith.constant dense<0.000000e+00> : vector<8x512xf32>
    %157 = tpu.matmul %156, %0, %cst_40 {dimension_numbers = #tpu.dot_dimension_numbers<[1], [0], [0], [1], [0, 0, 1, 1], [], []>} : vector<8x256xbf16>, vector<256x512xbf16>, vector<8x512xf32> -> vector<8x512xf32>
    %158 = vector.broadcast %1 : vector<1x512xf32> to vector<8x512xf32>
    %159 = arith.addf %157, %158 : vector<8x512xf32>
    %160 = vector.extract_strided_slice %159 {offsets = [0, 0], sizes = [8, 128], strides = [1, 1]} : vector<8x512xf32> to vector<8x128xf32>
    %161 = arith.negf %160 : vector<8x128xf32>
    %162 = math.exp %161 : vector<8x128xf32>
    %cst_41 = arith.constant 1.000000e+00 : f32
    %163 = vector.broadcast %cst_41 : f32 to vector<8x128xf32>
    %164 = arith.addf %163, %162 : vector<8x128xf32>
    %165 = arith.divf %163, %164 : vector<8x128xf32>
    %166 = vector.extract_strided_slice %159 {offsets = [0, 128], sizes = [8, 128], strides = [1, 1]} : vector<8x512xf32> to vector<8x128xf32>
    %167 = arith.negf %166 : vector<8x128xf32>
    %168 = math.exp %167 : vector<8x128xf32>
    %cst_42 = arith.constant 1.000000e+00 : f32
    %169 = vector.broadcast %cst_42 : f32 to vector<8x128xf32>
    %170 = arith.addf %169, %168 : vector<8x128xf32>
    %171 = arith.divf %169, %170 : vector<8x128xf32>
    %172 = vector.extract_strided_slice %159 {offsets = [0, 256], sizes = [8, 128], strides = [1, 1]} : vector<8x512xf32> to vector<8x128xf32>
    %173 = math.tanh %172 : vector<8x128xf32>
    %174 = vector.extract_strided_slice %159 {offsets = [0, 384], sizes = [8, 128], strides = [1, 1]} : vector<8x512xf32> to vector<8x128xf32>
    %175 = arith.negf %174 : vector<8x128xf32>
    %176 = math.exp %175 : vector<8x128xf32>
    %cst_43 = arith.constant 1.000000e+00 : f32
    %177 = vector.broadcast %cst_43 : f32 to vector<8x128xf32>
    %178 = arith.addf %177, %176 : vector<8x128xf32>
    %179 = arith.divf %177, %178 : vector<8x128xf32>
    %180 = arith.mulf %171, %145 : vector<8x128xf32>
    %181 = arith.mulf %165, %173 : vector<8x128xf32>
    %182 = arith.addf %180, %181 : vector<8x128xf32>
    %183 = math.tanh %182 : vector<8x128xf32>
    %184 = arith.mulf %179, %183 : vector<8x128xf32>
    %185 = arith.index_cast %c4_i32 : i32 to index
    %c0_44 = arith.constant 0 : index
    %c0_45 = arith.constant 0 : index
    %186 = vector.load %arg6[%185, %c0_44, %c0_45] : memref<8x8x128xf32, #tpu.memory_space<vmem>>, vector<1x8x128xf32>
    %187 = vector.shape_cast %186 : vector<1x8x128xf32> to vector<8x128xf32>
    %188 = vector.shape_cast %184 : vector<8x128xf32> to vector<1x8x128xf32>
    tpu.vector_store %arg6[%185, %c0_44, %c0_45], %188 {strides = array<i32>} : memref<8x8x128xf32, #tpu.memory_space<vmem>>, vector<1x8x128xf32>,
    %c5_i32 = arith.constant 5 : i32
    %189 = arith.index_cast %c5_i32 : i32 to index
    %c0_46 = arith.constant 0 : index
    %c0_47 = arith.constant 0 : index
    %190 = vector.load %arg1[%189, %c0_46, %c0_47] : memref<8x8x128xf32, #tpu.memory_space<vmem>>, vector<1x8x128xf32>
    %191 = vector.shape_cast %190 : vector<1x8x128xf32> to vector<8x128xf32>
    %192 = tpu.concatenate %191, %184 in 1 : vector<8x128xf32>, vector<8x128xf32> -> vector<8x256xf32>
    %193 = arith.truncf %192 : vector<8x256xf32> to vector<8x256xbf16>
    %cst_48 = arith.constant dense<0.000000e+00> : vector<8x512xf32>
    %194 = tpu.matmul %193, %0, %cst_48 {dimension_numbers = #tpu.dot_dimension_numbers<[1], [0], [0], [1], [0, 0, 1, 1], [], []>} : vector<8x256xbf16>, vector<256x512xbf16>, vector<8x512xf32> -> vector<8x512xf32>
    %195 = vector.broadcast %1 : vector<1x512xf32> to vector<8x512xf32>
    %196 = arith.addf %194, %195 : vector<8x512xf32>
    %197 = vector.extract_strided_slice %196 {offsets = [0, 0], sizes = [8, 128], strides = [1, 1]} : vector<8x512xf32> to vector<8x128xf32>
    %198 = arith.negf %197 : vector<8x128xf32>
    %199 = math.exp %198 : vector<8x128xf32>
    %cst_49 = arith.constant 1.000000e+00 : f32
    %200 = vector.broadcast %cst_49 : f32 to vector<8x128xf32>
    %201 = arith.addf %200, %199 : vector<8x128xf32>
    %202 = arith.divf %200, %201 : vector<8x128xf32>
    %203 = vector.extract_strided_slice %196 {offsets = [0, 128], sizes = [8, 128], strides = [1, 1]} : vector<8x512xf32> to vector<8x128xf32>
    %204 = arith.negf %203 : vector<8x128xf32>
    %205 = math.exp %204 : vector<8x128xf32>
    %cst_50 = arith.constant 1.000000e+00 : f32
    %206 = vector.broadcast %cst_50 : f32 to vector<8x128xf32>
    %207 = arith.addf %206, %205 : vector<8x128xf32>
    %208 = arith.divf %206, %207 : vector<8x128xf32>
    %209 = vector.extract_strided_slice %196 {offsets = [0, 256], sizes = [8, 128], strides = [1, 1]} : vector<8x512xf32> to vector<8x128xf32>
    %210 = math.tanh %209 : vector<8x128xf32>
    %211 = vector.extract_strided_slice %196 {offsets = [0, 384], sizes = [8, 128], strides = [1, 1]} : vector<8x512xf32> to vector<8x128xf32>
    %212 = arith.negf %211 : vector<8x128xf32>
    %213 = math.exp %212 : vector<8x128xf32>
    %cst_51 = arith.constant 1.000000e+00 : f32
    %214 = vector.broadcast %cst_51 : f32 to vector<8x128xf32>
    %215 = arith.addf %214, %213 : vector<8x128xf32>
    %216 = arith.divf %214, %215 : vector<8x128xf32>
    %217 = arith.mulf %208, %182 : vector<8x128xf32>
    %218 = arith.mulf %202, %210 : vector<8x128xf32>
    %219 = arith.addf %217, %218 : vector<8x128xf32>
    %220 = math.tanh %219 : vector<8x128xf32>
    %221 = arith.mulf %216, %220 : vector<8x128xf32>
    %222 = arith.index_cast %c5_i32 : i32 to index
    %c0_52 = arith.constant 0 : index
    %c0_53 = arith.constant 0 : index
    %223 = vector.load %arg6[%222, %c0_52, %c0_53] : memref<8x8x128xf32, #tpu.memory_space<vmem>>, vector<1x8x128xf32>
    %224 = vector.shape_cast %223 : vector<1x8x128xf32> to vector<8x128xf32>
    %225 = vector.shape_cast %221 : vector<8x128xf32> to vector<1x8x128xf32>
    tpu.vector_store %arg6[%222, %c0_52, %c0_53], %225 {strides = array<i32>} : memref<8x8x128xf32, #tpu.memory_space<vmem>>, vector<1x8x128xf32>,
    %c6_i32 = arith.constant 6 : i32
    %226 = arith.index_cast %c6_i32 : i32 to index
    %c0_54 = arith.constant 0 : index
    %c0_55 = arith.constant 0 : index
    %227 = vector.load %arg1[%226, %c0_54, %c0_55] : memref<8x8x128xf32, #tpu.memory_space<vmem>>, vector<1x8x128xf32>
    %228 = vector.shape_cast %227 : vector<1x8x128xf32> to vector<8x128xf32>
    %229 = tpu.concatenate %228, %221 in 1 : vector<8x128xf32>, vector<8x128xf32> -> vector<8x256xf32>
    %230 = arith.truncf %229 : vector<8x256xf32> to vector<8x256xbf16>
    %cst_56 = arith.constant dense<0.000000e+00> : vector<8x512xf32>
    %231 = tpu.matmul %230, %0, %cst_56 {dimension_numbers = #tpu.dot_dimension_numbers<[1], [0], [0], [1], [0, 0, 1, 1], [], []>} : vector<8x256xbf16>, vector<256x512xbf16>, vector<8x512xf32> -> vector<8x512xf32>
    %232 = vector.broadcast %1 : vector<1x512xf32> to vector<8x512xf32>
    %233 = arith.addf %231, %232 : vector<8x512xf32>
    %234 = vector.extract_strided_slice %233 {offsets = [0, 0], sizes = [8, 128], strides = [1, 1]} : vector<8x512xf32> to vector<8x128xf32>
    %235 = arith.negf %234 : vector<8x128xf32>
    %236 = math.exp %235 : vector<8x128xf32>
    %cst_57 = arith.constant 1.000000e+00 : f32
    %237 = vector.broadcast %cst_57 : f32 to vector<8x128xf32>
    %238 = arith.addf %237, %236 : vector<8x128xf32>
    %239 = arith.divf %237, %238 : vector<8x128xf32>
    %240 = vector.extract_strided_slice %233 {offsets = [0, 128], sizes = [8, 128], strides = [1, 1]} : vector<8x512xf32> to vector<8x128xf32>
    %241 = arith.negf %240 : vector<8x128xf32>
    %242 = math.exp %241 : vector<8x128xf32>
    %cst_58 = arith.constant 1.000000e+00 : f32
    %243 = vector.broadcast %cst_58 : f32 to vector<8x128xf32>
    %244 = arith.addf %243, %242 : vector<8x128xf32>
    %245 = arith.divf %243, %244 : vector<8x128xf32>
    %246 = vector.extract_strided_slice %233 {offsets = [0, 256], sizes = [8, 128], strides = [1, 1]} : vector<8x512xf32> to vector<8x128xf32>
    %247 = math.tanh %246 : vector<8x128xf32>
    %248 = vector.extract_strided_slice %233 {offsets = [0, 384], sizes = [8, 128], strides = [1, 1]} : vector<8x512xf32> to vector<8x128xf32>
    %249 = arith.negf %248 : vector<8x128xf32>
    %250 = math.exp %249 : vector<8x128xf32>
    %cst_59 = arith.constant 1.000000e+00 : f32
    %251 = vector.broadcast %cst_59 : f32 to vector<8x128xf32>
    %252 = arith.addf %251, %250 : vector<8x128xf32>
    %253 = arith.divf %251, %252 : vector<8x128xf32>
    %254 = arith.mulf %245, %219 : vector<8x128xf32>
    %255 = arith.mulf %239, %247 : vector<8x128xf32>
    %256 = arith.addf %254, %255 : vector<8x128xf32>
    %257 = math.tanh %256 : vector<8x128xf32>
    %258 = arith.mulf %253, %257 : vector<8x128xf32>
    %259 = arith.index_cast %c6_i32 : i32 to index
    %c0_60 = arith.constant 0 : index
    %c0_61 = arith.constant 0 : index
    %260 = vector.load %arg6[%259, %c0_60, %c0_61] : memref<8x8x128xf32, #tpu.memory_space<vmem>>, vector<1x8x128xf32>
    %261 = vector.shape_cast %260 : vector<1x8x128xf32> to vector<8x128xf32>
    %262 = vector.shape_cast %258 : vector<8x128xf32> to vector<1x8x128xf32>
    tpu.vector_store %arg6[%259, %c0_60, %c0_61], %262 {strides = array<i32>} : memref<8x8x128xf32, #tpu.memory_space<vmem>>, vector<1x8x128xf32>,
    %c7_i32 = arith.constant 7 : i32
    %263 = arith.index_cast %c7_i32 : i32 to index
    %c0_62 = arith.constant 0 : index
    %c0_63 = arith.constant 0 : index
    %264 = vector.load %arg1[%263, %c0_62, %c0_63] : memref<8x8x128xf32, #tpu.memory_space<vmem>>, vector<1x8x128xf32>
    %265 = vector.shape_cast %264 : vector<1x8x128xf32> to vector<8x128xf32>
    %266 = tpu.concatenate %265, %258 in 1 : vector<8x128xf32>, vector<8x128xf32> -> vector<8x256xf32>
    %267 = arith.truncf %266 : vector<8x256xf32> to vector<8x256xbf16>
    %cst_64 = arith.constant dense<0.000000e+00> : vector<8x512xf32>
    %268 = tpu.matmul %267, %0, %cst_64 {dimension_numbers = #tpu.dot_dimension_numbers<[1], [0], [0], [1], [0, 0, 1, 1], [], []>} : vector<8x256xbf16>, vector<256x512xbf16>, vector<8x512xf32> -> vector<8x512xf32>
    %269 = vector.broadcast %1 : vector<1x512xf32> to vector<8x512xf32>
    %270 = arith.addf %268, %269 : vector<8x512xf32>
    %271 = vector.extract_strided_slice %270 {offsets = [0, 0], sizes = [8, 128], strides = [1, 1]} : vector<8x512xf32> to vector<8x128xf32>
    %272 = arith.negf %271 : vector<8x128xf32>
    %273 = math.exp %272 : vector<8x128xf32>
    %cst_65 = arith.constant 1.000000e+00 : f32
    %274 = vector.broadcast %cst_65 : f32 to vector<8x128xf32>
    %275 = arith.addf %274, %273 : vector<8x128xf32>
    %276 = arith.divf %274, %275 : vector<8x128xf32>
    %277 = vector.extract_strided_slice %270 {offsets = [0, 128], sizes = [8, 128], strides = [1, 1]} : vector<8x512xf32> to vector<8x128xf32>
    %278 = arith.negf %277 : vector<8x128xf32>
    %279 = math.exp %278 : vector<8x128xf32>
    %cst_66 = arith.constant 1.000000e+00 : f32
    %280 = vector.broadcast %cst_66 : f32 to vector<8x128xf32>
    %281 = arith.addf %280, %279 : vector<8x128xf32>
    %282 = arith.divf %280, %281 : vector<8x128xf32>
    %283 = vector.extract_strided_slice %270 {offsets = [0, 256], sizes = [8, 128], strides = [1, 1]} : vector<8x512xf32> to vector<8x128xf32>
    %284 = math.tanh %283 : vector<8x128xf32>
    %285 = vector.extract_strided_slice %270 {offsets = [0, 384], sizes = [8, 128], strides = [1, 1]} : vector<8x512xf32> to vector<8x128xf32>
    %286 = arith.negf %285 : vector<8x128xf32>
    %287 = math.exp %286 : vector<8x128xf32>
    %cst_67 = arith.constant 1.000000e+00 : f32
    %288 = vector.broadcast %cst_67 : f32 to vector<8x128xf32>
    %289 = arith.addf %288, %287 : vector<8x128xf32>
    %290 = arith.divf %288, %289 : vector<8x128xf32>
    %291 = arith.mulf %282, %256 : vector<8x128xf32>
    %292 = arith.mulf %276, %284 : vector<8x128xf32>
    %293 = arith.addf %291, %292 : vector<8x128xf32>
    %294 = math.tanh %293 : vector<8x128xf32>
    %295 = arith.mulf %290, %294 : vector<8x128xf32>
    %296 = arith.index_cast %c7_i32 : i32 to index
    %c0_68 = arith.constant 0 : index
    %c0_69 = arith.constant 0 : index
    %297 = vector.load %arg6[%296, %c0_68, %c0_69] : memref<8x8x128xf32, #tpu.memory_space<vmem>>, vector<1x8x128xf32>
    %298 = vector.shape_cast %297 : vector<1x8x128xf32> to vector<8x128xf32>
    %299 = vector.shape_cast %295 : vector<8x128xf32> to vector<1x8x128xf32>
    tpu.vector_store %arg6[%296, %c0_68, %c0_69], %299 {strides = array<i32>} : memref<8x8x128xf32, #tpu.memory_space<vmem>>, vector<1x8x128xf32>,
    %c8_i32 = arith.constant 8 : i32
    return
  }
  func.func @transform_0(%arg0: i32) -> (i32, i32, i32) {
    %c0_i32 = arith.constant 0 : i32
    %c0_i32_0 = arith.constant 0 : i32
    %c0_i32_1 = arith.constant 0 : i32
    %c0_i32_2 = arith.constant 0 : i32
    return %c0_i32, %c0_i32_0, %c0_i32_1 : i32, i32, i32
  }
  func.func @transform_1(%arg0: i32) -> (i32, i32) {
    %c0_i32 = arith.constant 0 : i32
    %c0_i32_0 = arith.constant 0 : i32
    %c0_i32_1 = arith.constant 0 : i32
    return %c0_i32, %c0_i32_0 : i32, i32
  }
  func.func @transform_2(%arg0: i32) -> (i32, i32) {
    %c0_i32 = arith.constant 0 : i32
    %c0_i32_0 = arith.constant 0 : i32
    %c0_i32_1 = arith.constant 0 : i32
    return %c0_i32, %c0_i32_0 : i32, i32
  }
  func.func @transform_3(%arg0: i32) -> (i32, i32) {
    %c0_i32 = arith.constant 0 : i32
    %c0_i32_0 = arith.constant 0 : i32
    %c0_i32_1 = arith.constant 0 : i32
    return %c0_i32, %c0_i32_0 : i32, i32
  }
  func.func @transform_4(%arg0: i32) -> (i32, i32) {
    %c0_i32 = arith.constant 0 : i32
    %c0_i32_0 = arith.constant 0 : i32
    %c0_i32_1 = arith.constant 0 : i32
    return %c0_i32, %c0_i32_0 : i32, i32
  }
  func.func @transform_5(%arg0: i32) -> (i32, i32, i32) {
    %c0_i32 = arith.constant 0 : i32
    %c0_i32_0 = arith.constant 0 : i32
    %c0_i32_1 = arith.constant 0 : i32
    %c0_i32_2 = arith.constant 0 : i32
    return %c0_i32, %c0_i32_0, %c0_i32_1 : i32, i32, i32
  }
}

</mosaic_0001>

<llo_original>
// kernel: tpu_custom_call.1
$region0: #{tpu_custom_call.1}
  #allocation0 [shape = 'u32[]', space=smem, size = 0x4, offset = 0x4, fixed_abs, tag = 'smem constant byte address 0x4 - core index']
  #allocation1 [shape = 'u32[72,128]{1,0:T(1,128)}', space=vmem, size = 0x9000, scoped, tag = 'internal scratch']
  %s0 = inlined_call_operand.hbm [shape: f32[8,8,128], index: 0, kind: input, shape index: {}]
  %s1 = inlined_call_operand.hbm [shape: f32[8,128], index: 1, kind: input, shape index: {}]
  %s2 = inlined_call_operand.hbm [shape: f32[8,128], index: 2, kind: input, shape index: {}]
  %s3 = inlined_call_operand.hbm [shape: bf16[256,512], index: 3, kind: input, shape index: {}]
  %s4 = inlined_call_operand.hbm [shape: f32[1,512], index: 4, kind: input, shape index: {}]
  %s5 = inlined_call_operand.hbm [shape: f32[8,8,128], index: 5, kind: output, shape index: {}]
  %s6 = sld [smem:[#allocation0]]
  $region50: #{tpu_custom_call.1} parent=0
    _
  %s8 = ssub.s32 1, %s6
  %s9 = scalar_select 0, %s8, %s6
  $region1: #{tpu_custom_call.1} parent=0
    #allocation2 [shape = 'u8[32768]{0}', space=vmem, size = 0x8000, scoped, tag = 'input window, operand 0, single buffered']
    #allocation3 [shape = 's32[1]{0}', space=sflag, size = 0x4, scoped, tag = 'scoped memory for tpu_custom_call.1']
    #allocation4 [shape = 's32[1]{0}', space=sflag, size = 0x4, scoped, tag = 'scoped memory for tpu_custom_call.1']
    #allocation5 [shape = 'u8[4096]{0}', space=vmem, size = 0x1000, scoped, tag = 'input window, operand 1, single buffered']
    #allocation6 [shape = 's32[1]{0}', space=sflag, size = 0x4, scoped, tag = 'scoped memory for tpu_custom_call.1']
    #allocation7 [shape = 'u8[4096]{0}', space=vmem, size = 0x1000, scoped, tag = 'input window, operand 2, single buffered']
    #allocation8 [shape = 'u8[262144]{0}', space=vmem, size = 0x40000, scoped, tag = 'input window, operand 3, single buffered']
    #allocation9 [shape = 's32[1]{0}', space=sflag, size = 0x4, scoped, tag = 'scoped memory for tpu_custom_call.1']
    #allocation10 [shape = 'u8[2048]{0}', space=vmem, size = 0x800, scoped, tag = 'input window, operand 4, single buffered']
    #allocation11 [shape = 'u8[32768]{0}', space=vmem, size = 0x8000, scoped, tag = 'output window, operand 0, single buffered']
    %10 = vsyncpa [#allocation3], 0
    %11 = vsyncpa [#allocation6], 0
    %12 = vsyncpa [#allocation9], 0
    %13 = vsyncpa [#allocation4], 0
    // Predicated region
    $region2: #{tpu_custom_call.1} parent=1 // pred_check
      _
    $region3: #{tpu_custom_call.1} parent=1 // pred_check_branch
      %15 = sbr.rel (0) target = $region5
    $region4: #{tpu_custom_call.1} parent=1 // pred_region
      %17 = vsyncadd [#allocation3], 0
      %s18 = sshll.u32 %s0, 4
      %s19 = int_to_ptr.hbm [resolvable:$true] %s18
      %s20 = sshll.u32 [#allocation2], 4
      %s21 = int_to_ptr.vmem [resolvable:$true] %s20
      %26 = dma.hbm_to_vmem [thread:$0]  %s19, 1024, %s21, [#allocation3], 128, 128, 8
    $region5: #{tpu_custom_call.1} parent=1 // pred_fallthru
      _
    // Predicated region
    $region6: #{tpu_custom_call.1} parent=1 // pred_check
      _
    $region7: #{tpu_custom_call.1} parent=1 // pred_check_branch
      %28 = sbr.rel (0) target = $region9
    $region8: #{tpu_custom_call.1} parent=1 // pred_region
      %30 = vsyncadd [#allocation6], 0
      %s32 = sshll.u32 %s1, 4
      %s33 = int_to_ptr.hbm [resolvable:$true] %s32
      %s34 = sshll.u32 [#allocation5], 4
      %s35 = int_to_ptr.vmem [resolvable:$true] %s34
      %37 = dma.hbm_to_vmem [thread:$0]  %s33, 128, %s35, [#allocation6]
    $region9: #{tpu_custom_call.1} parent=1 // pred_fallthru
      _
    // Predicated region
    $region10: #{tpu_custom_call.1} parent=1 // pred_check
      _
    $region11: #{tpu_custom_call.1} parent=1 // pred_check_branch
      %39 = sbr.rel (0) target = $region13
    $region12: #{tpu_custom_call.1} parent=1 // pred_region
      %41 = vsyncadd [#allocation6], 0
      %s43 = sshll.u32 %s2, 4
      %s44 = int_to_ptr.hbm [resolvable:$true] %s43
      %s45 = sshll.u32 [#allocation7], 4
      %s46 = int_to_ptr.vmem [resolvable:$true] %s45
      %48 = dma.hbm_to_vmem [thread:$0]  %s44, 128, %s46, [#allocation6]
    $region13: #{tpu_custom_call.1} parent=1 // pred_fallthru
      _
    // Predicated region
    $region14: #{tpu_custom_call.1} parent=1 // pred_check
      _
    $region15: #{tpu_custom_call.1} parent=1 // pred_check_branch
      %50 = sbr.rel (0) target = $region17
    $region16: #{tpu_custom_call.1} parent=1 // pred_region
      %52 = vsyncadd [#allocation9], 0
      %s53 = sshll.u32 %s3, 4
      %s54 = int_to_ptr.hbm [resolvable:$true] %s53
      %s55 = sshll.u32 [#allocation8], 4
      %s56 = int_to_ptr.vmem [resolvable:$true] %s55
      %61 = dma.hbm_to_vmem [thread:$0]  %s54, 8192, %s56, [#allocation9], 256, 256, 16
    $region17: #{tpu_custom_call.1} parent=1 // pred_fallthru
      _
    // Predicated region
    $region18: #{tpu_custom_call.1} parent=1 // pred_check
      _
    $region19: #{tpu_custom_call.1} parent=1 // pred_check_branch
      %63 = sbr.rel (0) target = $region21
    $region20: #{tpu_custom_call.1} parent=1 // pred_region
      %65 = vsyncadd [#allocation9], 0
      %s67 = sshll.u32 %s4, 4
      %s68 = int_to_ptr.hbm [resolvable:$true] %s67
      %s69 = sshll.u32 [#allocation10], 4
      %s70 = int_to_ptr.vmem [resolvable:$true] %s69
      %72 = dma.hbm_to_vmem [thread:$0]  %s68, 64, %s70, [#allocation9]
    $region21: #{tpu_custom_call.1} parent=1 // pred_fallthru
      _
    // Predicated region
    $region22: #{tpu_custom_call.1} parent=1 // pred_check
      _
    $region23: #{tpu_custom_call.1} parent=1 // pred_check_branch
      %74 = sbr.rel (0) target = $region25
    $region24: #{tpu_custom_call.1} parent=1 // pred_region
      %76 = dma.done [#allocation3], 1024
    $region25: #{tpu_custom_call.1} parent=1 // pred_fallthru
      _
    // Predicated region
    $region26: #{tpu_custom_call.1} parent=1 // pred_check
      _
    $region27: #{tpu_custom_call.1} parent=1 // pred_check_branch
      %78 = sbr.rel (0) target = $region29
    $region28: #{tpu_custom_call.1} parent=1 // pred_region
      %80 = dma.done [#allocation6], 128
    $region29: #{tpu_custom_call.1} parent=1 // pred_fallthru
      _
    // Predicated region
    $region30: #{tpu_custom_call.1} parent=1 // pred_check
      _
    $region31: #{tpu_custom_call.1} parent=1 // pred_check_branch
      %82 = sbr.rel (0) target = $region33
    $region32: #{tpu_custom_call.1} parent=1 // pred_region
      %84 = dma.done [#allocation6], 128
    $region33: #{tpu_custom_call.1} parent=1 // pred_fallthru
      _
    // Predicated region
    $region34: #{tpu_custom_call.1} parent=1 // pred_check
      _
    $region35: #{tpu_custom_call.1} parent=1 // pred_check_branch
      %86 = sbr.rel (0) target = $region37
    $region36: #{tpu_custom_call.1} parent=1 // pred_region
      %88 = dma.done [#allocation9], 8192
    $region37: #{tpu_custom_call.1} parent=1 // pred_fallthru
      _
    // Predicated region
    $region38: #{tpu_custom_call.1} parent=1 // pred_check
      _
    $region39: #{tpu_custom_call.1} parent=1 // pred_check_branch
      %90 = sbr.rel (0) target = $region41
    $region40: #{tpu_custom_call.1} parent=1 // pred_region
      %92 = dma.done [#allocation9], 64
    $region41: #{tpu_custom_call.1} parent=1 // pred_fallthru
      _
    %v93 = vld [vmem:[#allocation8] sm:$0xff]
    %v94 = vld [vmem:[#allocation8 + $0x8] sm:$0xff]
    %v95 = vld [vmem:[#allocation8 + $0x10] sm:$0xff]
    %v96 = vld [vmem:[#allocation8 + $0x18] sm:$0xff]
    %v97 = vld [vmem:[#allocation8 + $0x20] sm:$0xff]
    %v98 = vld [vmem:[#allocation8 + $0x28] sm:$0xff]
    %v99 = vld [vmem:[#allocation8 + $0x30] sm:$0xff]
    %v100 = vld [vmem:[#allocation8 + $0x38] sm:$0xff]
    %v101 = vld [vmem:[#allocation8 + $0x40] sm:$0xff]
    %v102 = vld [vmem:[#allocation8 + $0x48] sm:$0xff]
    %v103 = vld [vmem:[#allocation8 + $0x50] sm:$0xff]
    %v104 = vld [vmem:[#allocation8 + $0x58] sm:$0xff]
    %v105 = vld [vmem:[#allocation8 + $0x60] sm:$0xff]
    %v106 = vld [vmem:[#allocation8 + $0x68] sm:$0xff]
    %v107 = vld [vmem:[#allocation8 + $0x70] sm:$0xff]
    %v108 = vld [vmem:[#allocation8 + $0x78] sm:$0xff]
    %v109 = vld [vmem:[#allocation8 + $0x80] sm:$0xff]
    %v110 = vld [vmem:[#allocation8 + $0x88] sm:$0xff]
    %v111 = vld [vmem:[#allocation8 + $0x90] sm:$0xff]
    %v112 = vld [vmem:[#allocation8 + $0x98] sm:$0xff]
    %v113 = vld [vmem:[#allocation8 + $0xa0] sm:$0xff]
    %v114 = vld [vmem:[#allocation8 + $0xa8] sm:$0xff]
    %v115 = vld [vmem:[#allocation8 + $0xb0] sm:$0xff]
    %v116 = vld [vmem:[#allocation8 + $0xb8] sm:$0xff]
    %v117 = vld [vmem:[#allocation8 + $0xc0] sm:$0xff]
    %v118 = vld [vmem:[#allocation8 + $0xc8] sm:$0xff]
    %v119 = vld [vmem:[#allocation8 + $0xd0] sm:$0xff]
    %v120 = vld [vmem:[#allocation8 + $0xd8] sm:$0xff]
    %v121 = vld [vmem:[#allocation8 + $0xe0] sm:$0xff]
    %v122 = vld [vmem:[#allocation8 + $0xe8] sm:$0xff]
    %v123 = vld [vmem:[#allocation8 + $0xf0] sm:$0xff]
    %v124 = vld [vmem:[#allocation8 + $0xf8] sm:$0xff]
    %v125 = vld [vmem:[#allocation8 + $0x100] sm:$0xff]
    %v126 = vld [vmem:[#allocation8 + $0x108] sm:$0xff]
    %v127 = vld [vmem:[#allocation8 + $0x110] sm:$0xff]
    %v128 = vld [vmem:[#allocation8 + $0x118] sm:$0xff]
    %v129 = vld [vmem:[#allocation8 + $0x120] sm:$0xff]
    %v130 = vld [vmem:[#allocation8 + $0x128] sm:$0xff]
    %v131 = vld [vmem:[#allocation8 + $0x130] sm:$0xff]
    %v132 = vld [vmem:[#allocation8 + $0x138] sm:$0xff]
    %v133 = vld [vmem:[#allocation8 + $0x140] sm:$0xff]
    %v134 = vld [vmem:[#allocation8 + $0x148] sm:$0xff]
    %v135 = vld [vmem:[#allocation8 + $0x150] sm:$0xff]
    %v136 = vld [vmem:[#allocation8 + $0x158] sm:$0xff]
    %v137 = vld [vmem:[#allocation8 + $0x160] sm:$0xff]
    %v138 = vld [vmem:[#allocation8 + $0x168] sm:$0xff]
    %v139 = vld [vmem:[#allocation8 + $0x170] sm:$0xff]
    %v140 = vld [vmem:[#allocation8 + $0x178] sm:$0xff]
    %v141 = vld [vmem:[#allocation8 + $0x180] sm:$0xff]
    %v142 = vld [vmem:[#allocation8 + $0x188] sm:$0xff]
    %v143 = vld [vmem:[#allocation8 + $0x190] sm:$0xff]
    %v144 = vld [vmem:[#allocation8 + $0x198] sm:$0xff]
    %v145 = vld [vmem:[#allocation8 + $0x1a0] sm:$0xff]
    %v146 = vld [vmem:[#allocation8 + $0x1a8] sm:$0xff]
    %v147 = vld [vmem:[#allocation8 + $0x1b0] sm:$0xff]
    %v148 = vld [vmem:[#allocation8 + $0x1b8] sm:$0xff]
    %v149 = vld [vmem:[#allocation8 + $0x1c0] sm:$0xff]
    %v150 = vld [vmem:[#allocation8 + $0x1c8] sm:$0xff]
    %v151 = vld [vmem:[#allocation8 + $0x1d0] sm:$0xff]
    %v152 = vld [vmem:[#allocation8 + $0x1d8] sm:$0xff]
    %v153 = vld [vmem:[#allocation8 + $0x1e0] sm:$0xff]
    %v154 = vld [vmem:[#allocation8 + $0x1e8] sm:$0xff]
    %v155 = vld [vmem:[#allocation8 + $0x1f0] sm:$0xff]
    %v156 = vld [vmem:[#allocation8 + $0x1f8] sm:$0xff]
    %v157 = vld [vmem:[#allocation10] sm:$0xf]
    %v158 = vld [vmem:[#allocation5] sm:$0xff]
    %v159 = vld [vmem:[#allocation7] sm:$0xff]
    %v160 = vld [vmem:[#allocation2] sm:$0xff]
    %v161 = vpack.c.bf16 %v160, %v160
    %v162 = vpack.c.bf16 %v158, %v158
    %v164 = vperm.slane %v157, 0
    %v165 = vperm.slane %v157, 1
    %v166 = vperm.slane %v157, 2
    %v167 = vperm.slane %v157, 3
    %v236 = vunpack.c.l.b16 %v93
    %v237 = vunpack.c.h.b16 %v93
    %v238 = vunpack.c.l.b16 %v94
    %v239 = vunpack.c.h.b16 %v94
    %v240 = vunpack.c.l.b16 %v95
    %v241 = vunpack.c.h.b16 %v95
    %v242 = vunpack.c.l.b16 %v96
    %v243 = vunpack.c.h.b16 %v96
    %v244 = vunpack.c.l.b16 %v97
    %v245 = vunpack.c.h.b16 %v97
    %v246 = vunpack.c.l.b16 %v98
    %v247 = vunpack.c.h.b16 %v98
    %v248 = vunpack.c.l.b16 %v99
    %v249 = vunpack.c.h.b16 %v99
    %v250 = vunpack.c.l.b16 %v100
    %v251 = vunpack.c.h.b16 %v100
    %v252 = vunpack.c.l.b16 %v101
    %v253 = vunpack.c.h.b16 %v101
    %v254 = vunpack.c.l.b16 %v102
    %v255 = vunpack.c.h.b16 %v102
    %v256 = vunpack.c.l.b16 %v103
    %v257 = vunpack.c.h.b16 %v103
    %v258 = vunpack.c.l.b16 %v104
    %v259 = vunpack.c.h.b16 %v104
    %v260 = vunpack.c.l.b16 %v105
    %v261 = vunpack.c.h.b16 %v105
    %v262 = vunpack.c.l.b16 %v106
    %v263 = vunpack.c.h.b16 %v106
    %v264 = vunpack.c.l.b16 %v107
    %v265 = vunpack.c.h.b16 %v107
    %v266 = vunpack.c.l.b16 %v108
    %v267 = vunpack.c.h.b16 %v108
    %v268 = vunpack.c.l.b16 %v109
    %v269 = vunpack.c.h.b16 %v109
    %v270 = vunpack.c.l.b16 %v110
    %v271 = vunpack.c.h.b16 %v110
    %v272 = vunpack.c.l.b16 %v111
    %v273 = vunpack.c.h.b16 %v111
    %v274 = vunpack.c.l.b16 %v112
    %v275 = vunpack.c.h.b16 %v112
    %v276 = vunpack.c.l.b16 %v113
    %v277 = vunpack.c.h.b16 %v113
    %v278 = vunpack.c.l.b16 %v114
    %v279 = vunpack.c.h.b16 %v114
    %v280 = vunpack.c.l.b16 %v115
    %v281 = vunpack.c.h.b16 %v115
    %v282 = vunpack.c.l.b16 %v116
    %v283 = vunpack.c.h.b16 %v116
    %v284 = vunpack.c.l.b16 %v117
    %v285 = vunpack.c.h.b16 %v117
    %v286 = vunpack.c.l.b16 %v118
    %v287 = vunpack.c.h.b16 %v118
    %v288 = vunpack.c.l.b16 %v119
    %v289 = vunpack.c.h.b16 %v119
    %v290 = vunpack.c.l.b16 %v120
    %v291 = vunpack.c.h.b16 %v120
    %v292 = vunpack.c.l.b16 %v121
    %v293 = vunpack.c.h.b16 %v121
    %v294 = vunpack.c.l.b16 %v122
    %v295 = vunpack.c.h.b16 %v122
    %v296 = vunpack.c.l.b16 %v123
    %v297 = vunpack.c.h.b16 %v123
    %v298 = vunpack.c.l.b16 %v124
    %v299 = vunpack.c.h.b16 %v124
    %v300 = vunpack.c.l.b16 %v125
    %v301 = vunpack.c.h.b16 %v125
    %v302 = vunpack.c.l.b16 %v126
    %v303 = vunpack.c.h.b16 %v126
    %v304 = vunpack.c.l.b16 %v127
    %v305 = vunpack.c.h.b16 %v127
    %v306 = vunpack.c.l.b16 %v128
    %v307 = vunpack.c.h.b16 %v128
    %v308 = vunpack.c.l.b16 %v129
    %v309 = vunpack.c.h.b16 %v129
    %v310 = vunpack.c.l.b16 %v130
    %v311 = vunpack.c.h.b16 %v130
    %v312 = vunpack.c.l.b16 %v131
    %v313 = vunpack.c.h.b16 %v131
    %v314 = vunpack.c.l.b16 %v132
    %v315 = vunpack.c.h.b16 %v132
    %v316 = vunpack.c.l.b16 %v133
    %v317 = vunpack.c.h.b16 %v133
    %v318 = vunpack.c.l.b16 %v134
    %v319 = vunpack.c.h.b16 %v134
    %v320 = vunpack.c.l.b16 %v135
    %v321 = vunpack.c.h.b16 %v135
    %v322 = vunpack.c.l.b16 %v136
    %v323 = vunpack.c.h.b16 %v136
    %v324 = vunpack.c.l.b16 %v137
    %v325 = vunpack.c.h.b16 %v137
    %v326 = vunpack.c.l.b16 %v138
    %v327 = vunpack.c.h.b16 %v138
    %v328 = vunpack.c.l.b16 %v139
    %v329 = vunpack.c.h.b16 %v139
    %v330 = vunpack.c.l.b16 %v140
    %v331 = vunpack.c.h.b16 %v140
    %v332 = vunpack.c.l.b16 %v141
    %v333 = vunpack.c.h.b16 %v141
    %v334 = vunpack.c.l.b16 %v142
    %v335 = vunpack.c.h.b16 %v142
    %v336 = vunpack.c.l.b16 %v143
    %v337 = vunpack.c.h.b16 %v143
    %v338 = vunpack.c.l.b16 %v144
    %v339 = vunpack.c.h.b16 %v144
    %v340 = vunpack.c.l.b16 %v145
    %v341 = vunpack.c.h.b16 %v145
    %v342 = vunpack.c.l.b16 %v146
    %v343 = vunpack.c.h.b16 %v146
    %v344 = vunpack.c.l.b16 %v147
    %v345 = vunpack.c.h.b16 %v147
    %v346 = vunpack.c.l.b16 %v148
    %v347 = vunpack.c.h.b16 %v148
    %v348 = vunpack.c.l.b16 %v149
    %v349 = vunpack.c.h.b16 %v149
    %v350 = vunpack.c.l.b16 %v150
    %v351 = vunpack.c.h.b16 %v150
    %v352 = vunpack.c.l.b16 %v151
    %v353 = vunpack.c.h.b16 %v151
    %v354 = vunpack.c.l.b16 %v152
    %v355 = vunpack.c.h.b16 %v152
    %v356 = vunpack.c.l.b16 %v153
    %v357 = vunpack.c.h.b16 %v153
    %v358 = vunpack.c.l.b16 %v154
    %v359 = vunpack.c.h.b16 %v154
    %v360 = vunpack.c.l.b16 %v155
    %v361 = vunpack.c.h.b16 %v155
    %v362 = vunpack.c.l.b16 %v156
    %v363 = vunpack.c.h.b16 %v156
    %v364 = vpack.c.b16 %v240, %v236
    %v365 = vpack.c.b16 %v241, %v237
    %v366 = vpack.c.b16 %v242, %v238
    %v367 = vpack.c.b16 %v243, %v239
    %v368 = vpack.c.b16 %v248, %v244
    %v369 = vpack.c.b16 %v249, %v245
    %v370 = vpack.c.b16 %v250, %v246
    %v371 = vpack.c.b16 %v251, %v247
    %v372 = vpack.c.b16 %v256, %v252
    %v373 = vpack.c.b16 %v257, %v253
    %v374 = vpack.c.b16 %v258, %v254
    %v375 = vpack.c.b16 %v259, %v255
    %v376 = vpack.c.b16 %v264, %v260
    %v377 = vpack.c.b16 %v265, %v261
    %v378 = vpack.c.b16 %v266, %v262
    %v379 = vpack.c.b16 %v267, %v263
    %v380 = vpack.c.b16 %v272, %v268
    %v381 = vpack.c.b16 %v273, %v269
    %v382 = vpack.c.b16 %v274, %v270
    %v383 = vpack.c.b16 %v275, %v271
    %v384 = vpack.c.b16 %v280, %v276
    %v385 = vpack.c.b16 %v281, %v277
    %v386 = vpack.c.b16 %v282, %v278
    %v387 = vpack.c.b16 %v283, %v279
    %v388 = vpack.c.b16 %v288, %v284
    %v389 = vpack.c.b16 %v289, %v285
    %v390 = vpack.c.b16 %v290, %v286
    %v391 = vpack.c.b16 %v291, %v287
    %v392 = vpack.c.b16 %v296, %v292
    %v393 = vpack.c.b16 %v297, %v293
    %v394 = vpack.c.b16 %v298, %v294
    %v395 = vpack.c.b16 %v299, %v295
    %v396 = vpack.c.b16 %v304, %v300
    %v397 = vpack.c.b16 %v305, %v301
    %v398 = vpack.c.b16 %v306, %v302
    %v399 = vpack.c.b16 %v307, %v303
    %v400 = vpack.c.b16 %v312, %v308
    %v401 = vpack.c.b16 %v313, %v309
    %v402 = vpack.c.b16 %v314, %v310
    %v403 = vpack.c.b16 %v315, %v311
    %v404 = vpack.c.b16 %v320, %v316
    %v405 = vpack.c.b16 %v321, %v317
    %v406 = vpack.c.b16 %v322, %v318
    %v407 = vpack.c.b16 %v323, %v319
    %v408 = vpack.c.b16 %v328, %v324
    %v409 = vpack.c.b16 %v329, %v325
    %v410 = vpack.c.b16 %v330, %v326
    %v411 = vpack.c.b16 %v331, %v327
    %v412 = vpack.c.b16 %v336, %v332
    %v413 = vpack.c.b16 %v337, %v333
    %v414 = vpack.c.b16 %v338, %v334
    %v415 = vpack.c.b16 %v339, %v335
    %v416 = vpack.c.b16 %v344, %v340
    %v417 = vpack.c.b16 %v345, %v341
    %v418 = vpack.c.b16 %v346, %v342
    %v419 = vpack.c.b16 %v347, %v343
    %v420 = vpack.c.b16 %v352, %v348
    %v421 = vpack.c.b16 %v353, %v349
    %v422 = vpack.c.b16 %v354, %v350
    %v423 = vpack.c.b16 %v355, %v351
    %v424 = vpack.c.b16 %v360, %v356
    %v425 = vpack.c.b16 %v361, %v357
    %v426 = vpack.c.b16 %v362, %v358
    %v427 = vpack.c.b16 %v363, %v359
    %492 = vmatpush.bf16.msra.mxu0 %v392
    %493 = vmatpush.bf16.msra.mxu0 %v388
    %494 = vmatpush.bf16.msra.mxu0 %v384
    %495 = vmatpush.bf16.msra.mxu0 %v380
    %496 = vmatpush.bf16.msra.mxu0 %v376
    %497 = vmatpush.bf16.msra.mxu0 %v372
    %498 = vmatpush.bf16.msra.mxu0 %v368
    %499 = vmatpush.bf16.msra.mxu0 %v364
    %500 = vmatmul.bf16.gmra.mxu0 %v161
    %v501 = vpop.f32.mrf.mxu0
    %v502 = vadd.f32 %v164, %v501
    %v503 = vpop.f32.mrf.mxu0
    %504 = vdwg.mxu0
    %505 = vmatpush.bf16.msra.mxu0 %v424
    %506 = vmatpush.bf16.msra.mxu0 %v420
    %507 = vmatpush.bf16.msra.mxu0 %v416
    %508 = vmatpush.bf16.msra.mxu0 %v412
    %509 = vmatpush.bf16.msra.mxu0 %v408
    %510 = vmatpush.bf16.msra.mxu0 %v404
    %511 = vmatpush.bf16.msra.mxu0 %v400
    %512 = vmatpush.bf16.msra.mxu0 %v396
    %513 = vmatmul.bf16.gmra.mxu0 %v162
    %v514 = vpop.f32.mrf.mxu0
    %v515 = vadd.f32 %v502, %v514
    %v516 = vpop.f32.mrf.mxu0
    %517 = vdwg.mxu0
    %518 = vmatpush.bf16.msra.mxu0 %v393
    %519 = vmatpush.bf16.msra.mxu0 %v389
    %520 = vmatpush.bf16.msra.mxu0 %v385
    %521 = vmatpush.bf16.msra.mxu0 %v381
    %522 = vmatpush.bf16.msra.mxu0 %v377
    %523 = vmatpush.bf16.msra.mxu0 %v373
    %524 = vmatpush.bf16.msra.mxu0 %v369
    %525 = vmatpush.bf16.msra.mxu0 %v365
    %526 = vmatmul.bf16.gmra.mxu0 %v161
    %v527 = vpop.f32.mrf.mxu0
    %v528 = vadd.f32 %v165, %v527
    %v529 = vpop.f32.mrf.mxu0
    %530 = vdwg.mxu0
    %531 = vmatpush.bf16.msra.mxu0 %v425
    %532 = vmatpush.bf16.msra.mxu0 %v421
    %533 = vmatpush.bf16.msra.mxu0 %v417
    %534 = vmatpush.bf16.msra.mxu0 %v413
    %535 = vmatpush.bf16.msra.mxu0 %v409
    %536 = vmatpush.bf16.msra.mxu0 %v405
    %537 = vmatpush.bf16.msra.mxu0 %v401
    %538 = vmatpush.bf16.msra.mxu0 %v397
    %539 = vmatmul.bf16.gmra.mxu0 %v162
    %v540 = vpop.f32.mrf.mxu0
    %v541 = vadd.f32 %v528, %v540
    %v542 = vpop.f32.mrf.mxu0
    %543 = vdwg.mxu0
    %544 = vmatpush.bf16.msra.mxu0 %v394
    %545 = vmatpush.bf16.msra.mxu0 %v390
    %546 = vmatpush.bf16.msra.mxu0 %v386
    %547 = vmatpush.bf16.msra.mxu0 %v382
    %548 = vmatpush.bf16.msra.mxu0 %v378
    %549 = vmatpush.bf16.msra.mxu0 %v374
    %550 = vmatpush.bf16.msra.mxu0 %v370
    %551 = vmatpush.bf16.msra.mxu0 %v366
    %552 = vmatmul.bf16.gmra.mxu0 %v161
    %v553 = vpop.f32.mrf.mxu0
    %v554 = vadd.f32 %v166, %v553
    %v555 = vpop.f32.mrf.mxu0
    %556 = vdwg.mxu0
    %557 = vmatpush.bf16.msra.mxu0 %v426
    %558 = vmatpush.bf16.msra.mxu0 %v422
    %559 = vmatpush.bf16.msra.mxu0 %v418
    %560 = vmatpush.bf16.msra.mxu0 %v414
    %561 = vmatpush.bf16.msra.mxu0 %v410
    %562 = vmatpush.bf16.msra.mxu0 %v406
    %563 = vmatpush.bf16.msra.mxu0 %v402
    %564 = vmatpush.bf16.msra.mxu0 %v398
    %565 = vmatmul.bf16.gmra.mxu0 %v162
    %v566 = vpop.f32.mrf.mxu0
    %v567 = vadd.f32 %v554, %v566
    %v568 = vpop.f32.mrf.mxu0
    %569 = vdwg.mxu0
    %570 = vmatpush.bf16.msra.mxu0 %v395
    %571 = vmatpush.bf16.msra.mxu0 %v391
    %572 = vmatpush.bf16.msra.mxu0 %v387
    %573 = vmatpush.bf16.msra.mxu0 %v383
    %574 = vmatpush.bf16.msra.mxu0 %v379
    %575 = vmatpush.bf16.msra.mxu0 %v375
    %576 = vmatpush.bf16.msra.mxu0 %v371
    %577 = vmatpush.bf16.msra.mxu0 %v367
    %578 = vmatmul.bf16.gmra.mxu0 %v161
    %v579 = vpop.f32.mrf.mxu0
    %v580 = vadd.f32 %v167, %v579
    %v581 = vpop.f32.mrf.mxu0
    %582 = vdwg.mxu0
    %583 = vmatpush.bf16.msra.mxu0 %v427
    %584 = vmatpush.bf16.msra.mxu0 %v423
    %585 = vmatpush.bf16.msra.mxu0 %v419
    %586 = vmatpush.bf16.msra.mxu0 %v415
    %587 = vmatpush.bf16.msra.mxu0 %v411
    %588 = vmatpush.bf16.msra.mxu0 %v407
    %589 = vmatpush.bf16.msra.mxu0 %v403
    %590 = vmatpush.bf16.msra.mxu0 %v399
    %591 = vmatmul.bf16.gmra.mxu0 %v162
    %v592 = vpop.f32.mrf.mxu0
    %v593 = vadd.f32 %v580, %v592
    %v594 = vpop.f32.mrf.mxu0
    %595 = vdwg.mxu0
    %v596 = vxor.u32 %v515, 2147483648
    %v597 = vmul.f32 %v596, 1.442695
    %v598 = vpow.pop %v597
    %v599 = vadd.f32 %v598, 1.0
    %v600 = vrcp.pop %v599
    %v601 = vmul.f32 %v599, %v600
    %v602 = vsub.f32 1.0, %v601
    %v603 = vmul.f32 %v600, %v602
    %v604 = vadd.f32 %v600, %v603
    %vm605 = vweird.f32 %v599
    %vm606 = vweird.f32 %v600
    %vm607 = vmor %vm605, %vm606
    %v608 = vsel %vm607, %v600, %v604
    %v609 = vand.u32 2147483647, %v599
    %vm610 = vcmp.eq.f32.partialorder %v609, 8.507059e+37
    %v611 = vand.u32 %v599, 2147483648
    %v612 = vor.u32 1.1754944e-38, %v611
    %v613 = vsel %vm610, %v612, %v608
    %v614 = vmul.f32 1.0, %v613
    %v615 = vxor.u32 %v541, 2147483648
    %v616 = vmul.f32 %v615, 1.442695
    %v617 = vpow.pop %v616
    %v618 = vadd.f32 %v617, 1.0
    %v619 = vrcp.pop %v618
    %v620 = vmul.f32 %v618, %v619
    %v621 = vsub.f32 1.0, %v620
    %v622 = vmul.f32 %v619, %v621
    %v623 = vadd.f32 %v619, %v622
    %vm624 = vweird.f32 %v618
    %vm625 = vweird.f32 %v619
    %vm626 = vmor %vm624, %vm625
    %v627 = vsel %vm626, %v619, %v623
    %v628 = vand.u32 2147483647, %v618
    %vm629 = vcmp.eq.f32.partialorder %v628, 8.507059e+37
    %v630 = vand.u32 %v618, 2147483648
    %v631 = vor.u32 1.1754944e-38, %v630
    %v632 = vsel %vm629, %v631, %v627
    %v633 = vmul.f32 1.0, %v632
    %v634 = vtanh.pop %v567
    %v635 = vxor.u32 %v593, 2147483648
    %v636 = vmul.f32 %v635, 1.442695
    %v637 = vpow.pop %v636
    %v638 = vadd.f32 %v637, 1.0
    %v639 = vrcp.pop %v638
    %v640 = vmul.f32 %v638, %v639
    %v641 = vsub.f32 1.0, %v640
    %v642 = vmul.f32 %v639, %v641
    %v643 = vadd.f32 %v639, %v642
    %vm644 = vweird.f32 %v638
    %vm645 = vweird.f32 %v639
    %vm646 = vmor %vm644, %vm645
    %v647 = vsel %vm646, %v639, %v643
    %v648 = vand.u32 2147483647, %v638
    %vm649 = vcmp.eq.f32.partialorder %v648, 8.507059e+37
    %v650 = vand.u32 %v638, 2147483648
    %v651 = vor.u32 1.1754944e-38, %v650
    %v652 = vsel %vm649, %v651, %v647
    %v653 = vmul.f32 1.0, %v652
    %v654 = vmul.f32 %v633, %v159
    %v655 = vmul.f32 %v614, %v634
    %v656 = vadd.f32 %v654, %v655
    %v657 = vtanh.pop %v656
    %v658 = vmul.f32 %v653, %v657
    %659 = vst [vmem:[#allocation11] sm:$0xff] %v658
    %s660 = scalar_lea.vmem [#allocation2], 8
    %v661 = vld [vmem:[%s660] sm:$0xff]
    %v662 = vpack.c.bf16 %v661, %v661
    %v663 = vpack.c.bf16 %v658, %v658
    %664 = vmatpush.bf16.msra.mxu0 %v392
    %665 = vmatpush.bf16.msra.mxu0 %v388
    %666 = vmatpush.bf16.msra.mxu0 %v384
    %667 = vmatpush.bf16.msra.mxu0 %v380
    %668 = vmatpush.bf16.msra.mxu0 %v376
    %669 = vmatpush.bf16.msra.mxu0 %v372
    %670 = vmatpush.bf16.msra.mxu0 %v368
    %671 = vmatpush.bf16.msra.mxu0 %v364
    %672 = vmatmul.bf16.gmra.mxu0 %v662
    %v673 = vpop.f32.mrf.mxu0
    %v674 = vadd.f32 %v164, %v673
    %v675 = vpop.f32.mrf.mxu0
    %676 = vdwg.mxu0
    %677 = vmatpush.bf16.msra.mxu0 %v424
    %678 = vmatpush.bf16.msra.mxu0 %v420
    %679 = vmatpush.bf16.msra.mxu0 %v416
    %680 = vmatpush.bf16.msra.mxu0 %v412
    %681 = vmatpush.bf16.msra.mxu0 %v408
    %682 = vmatpush.bf16.msra.mxu0 %v404
    %683 = vmatpush.bf16.msra.mxu0 %v400
    %684 = vmatpush.bf16.msra.mxu0 %v396
    %685 = vmatmul.bf16.gmra.mxu0 %v663
    %v686 = vpop.f32.mrf.mxu0
    %v687 = vadd.f32 %v674, %v686
    %v688 = vpop.f32.mrf.mxu0
    %689 = vdwg.mxu0
    %690 = vmatpush.bf16.msra.mxu0 %v393
    %691 = vmatpush.bf16.msra.mxu0 %v389
    %692 = vmatpush.bf16.msra.mxu0 %v385
    %693 = vmatpush.bf16.msra.mxu0 %v381
    %694 = vmatpush.bf16.msra.mxu0 %v377
    %695 = vmatpush.bf16.msra.mxu0 %v373
    %696 = vmatpush.bf16.msra.mxu0 %v369
    %697 = vmatpush.bf16.msra.mxu0 %v365
    %698 = vmatmul.bf16.gmra.mxu0 %v662
    %v699 = vpop.f32.mrf.mxu0
    %v700 = vadd.f32 %v165, %v699
    %v701 = vpop.f32.mrf.mxu0
    %702 = vdwg.mxu0
    %703 = vmatpush.bf16.msra.mxu0 %v425
    %704 = vmatpush.bf16.msra.mxu0 %v421
    %705 = vmatpush.bf16.msra.mxu0 %v417
    %706 = vmatpush.bf16.msra.mxu0 %v413
    %707 = vmatpush.bf16.msra.mxu0 %v409
    %708 = vmatpush.bf16.msra.mxu0 %v405
    %709 = vmatpush.bf16.msra.mxu0 %v401
    %710 = vmatpush.bf16.msra.mxu0 %v397
    %711 = vmatmul.bf16.gmra.mxu0 %v663
    %v712 = vpop.f32.mrf.mxu0
    %v713 = vadd.f32 %v700, %v712
    %v714 = vpop.f32.mrf.mxu0
    %715 = vdwg.mxu0
    %716 = vmatpush.bf16.msra.mxu0 %v394
    %717 = vmatpush.bf16.msra.mxu0 %v390
    %718 = vmatpush.bf16.msra.mxu0 %v386
    %719 = vmatpush.bf16.msra.mxu0 %v382
    %720 = vmatpush.bf16.msra.mxu0 %v378
    %721 = vmatpush.bf16.msra.mxu0 %v374
    %722 = vmatpush.bf16.msra.mxu0 %v370
    %723 = vmatpush.bf16.msra.mxu0 %v366
    %724 = vmatmul.bf16.gmra.mxu0 %v662
    %v725 = vpop.f32.mrf.mxu0
    %v726 = vadd.f32 %v166, %v725
    %v727 = vpop.f32.mrf.mxu0
    %728 = vdwg.mxu0
    %729 = vmatpush.bf16.msra.mxu0 %v426
    %730 = vmatpush.bf16.msra.mxu0 %v422
    %731 = vmatpush.bf16.msra.mxu0 %v418
    %732 = vmatpush.bf16.msra.mxu0 %v414
    %733 = vmatpush.bf16.msra.mxu0 %v410
    %734 = vmatpush.bf16.msra.mxu0 %v406
    %735 = vmatpush.bf16.msra.mxu0 %v402
    %736 = vmatpush.bf16.msra.mxu0 %v398
    %737 = vmatmul.bf16.gmra.mxu0 %v663
    %v738 = vpop.f32.mrf.mxu0
    %v739 = vadd.f32 %v726, %v738
    %v740 = vpop.f32.mrf.mxu0
    %741 = vdwg.mxu0
    %742 = vmatpush.bf16.msra.mxu0 %v395
    %743 = vmatpush.bf16.msra.mxu0 %v391
    %744 = vmatpush.bf16.msra.mxu0 %v387
    %745 = vmatpush.bf16.msra.mxu0 %v383
    %746 = vmatpush.bf16.msra.mxu0 %v379
    %747 = vmatpush.bf16.msra.mxu0 %v375
    %748 = vmatpush.bf16.msra.mxu0 %v371
    %749 = vmatpush.bf16.msra.mxu0 %v367
    %750 = vmatmul.bf16.gmra.mxu0 %v662
    %v751 = vpop.f32.mrf.mxu0
    %v752 = vadd.f32 %v167, %v751
    %v753 = vpop.f32.mrf.mxu0
    %754 = vdwg.mxu0
    %755 = vmatpush.bf16.msra.mxu0 %v427
    %756 = vmatpush.bf16.msra.mxu0 %v423
    %757 = vmatpush.bf16.msra.mxu0 %v419
    %758 = vmatpush.bf16.msra.mxu0 %v415
    %759 = vmatpush.bf16.msra.mxu0 %v411
    %760 = vmatpush.bf16.msra.mxu0 %v407
    %761 = vmatpush.bf16.msra.mxu0 %v403
    %762 = vmatpush.bf16.msra.mxu0 %v399
    %763 = vmatmul.bf16.gmra.mxu0 %v663
    %v764 = vpop.f32.mrf.mxu0
    %v765 = vadd.f32 %v752, %v764
    %v766 = vpop.f32.mrf.mxu0
    %767 = vdwg.mxu0
    %v768 = vxor.u32 %v687, 2147483648
    %v769 = vmul.f32 %v768, 1.442695
    %v770 = vpow.pop %v769
    %v771 = vadd.f32 %v770, 1.0
    %v772 = vrcp.pop %v771
    %v773 = vmul.f32 %v771, %v772
    %v774 = vsub.f32 1.0, %v773
    %v775 = vmul.f32 %v772, %v774
    %v776 = vadd.f32 %v772, %v775
    %vm777 = vweird.f32 %v771
    %vm778 = vweird.f32 %v772
    %vm779 = vmor %vm777, %vm778
    %v780 = vsel %vm779, %v772, %v776
    %v781 = vand.u32 2147483647, %v771
    %vm782 = vcmp.eq.f32.partialorder %v781, 8.507059e+37
    %v783 = vand.u32 %v771, 2147483648
    %v784 = vor.u32 1.1754944e-38, %v783
    %v785 = vsel %vm782, %v784, %v780
    %v786 = vmul.f32 1.0, %v785
    %v787 = vxor.u32 %v713, 2147483648
    %v788 = vmul.f32 %v787, 1.442695
    %v789 = vpow.pop %v788
    %v790 = vadd.f32 %v789, 1.0
    %v791 = vrcp.pop %v790
    %v792 = vmul.f32 %v790, %v791
    %v793 = vsub.f32 1.0, %v792
    %v794 = vmul.f32 %v791, %v793
    %v795 = vadd.f32 %v791, %v794
    %vm796 = vweird.f32 %v790
    %vm797 = vweird.f32 %v791
    %vm798 = vmor %vm796, %vm797
    %v799 = vsel %vm798, %v791, %v795
    %v800 = vand.u32 2147483647, %v790
    %vm801 = vcmp.eq.f32.partialorder %v800, 8.507059e+37
    %v802 = vand.u32 %v790, 2147483648
    %v803 = vor.u32 1.1754944e-38, %v802
    %v804 = vsel %vm801, %v803, %v799
    %v805 = vmul.f32 1.0, %v804
    %v806 = vtanh.pop %v739
    %v807 = vxor.u32 %v765, 2147483648
    %v808 = vmul.f32 %v807, 1.442695
    %v809 = vpow.pop %v808
    %v810 = vadd.f32 %v809, 1.0
    %v811 = vrcp.pop %v810
    %v812 = vmul.f32 %v810, %v811
    %v813 = vsub.f32 1.0, %v812
    %v814 = vmul.f32 %v811, %v813
    %v815 = vadd.f32 %v811, %v814
    %vm816 = vweird.f32 %v810
    %vm817 = vweird.f32 %v811
    %vm818 = vmor %vm816, %vm817
    %v819 = vsel %vm818, %v811, %v815
    %v820 = vand.u32 2147483647, %v810
    %vm821 = vcmp.eq.f32.partialorder %v820, 8.507059e+37
    %v822 = vand.u32 %v810, 2147483648
    %v823 = vor.u32 1.1754944e-38, %v822
    %v824 = vsel %vm821, %v823, %v819
    %v825 = vmul.f32 1.0, %v824
    %v826 = vmul.f32 %v805, %v656
    %v827 = vmul.f32 %v786, %v806
    %v828 = vadd.f32 %v826, %v827
    %v829 = vtanh.pop %v828
    %v830 = vmul.f32 %v825, %v829
    %s831 = scalar_lea.vmem [#allocation11], 8
    %832 = vst [vmem:[%s831] sm:$0xff] %v830
    %s833 = scalar_lea.vmem [#allocation2], 16
    %v834 = vld [vmem:[%s833] sm:$0xff]
    %v835 = vpack.c.bf16 %v834, %v834
    %v836 = vpack.c.bf16 %v830, %v830
    %837 = vmatpush.bf16.msra.mxu0 %v392
    %838 = vmatpush.bf16.msra.mxu0 %v388
    %839 = vmatpush.bf16.msra.mxu0 %v384
    %840 = vmatpush.bf16.msra.mxu0 %v380
    %841 = vmatpush.bf16.msra.mxu0 %v376
    %842 = vmatpush.bf16.msra.mxu0 %v372
    %843 = vmatpush.bf16.msra.mxu0 %v368
    %844 = vmatpush.bf16.msra.mxu0 %v364
    %845 = vmatmul.bf16.gmra.mxu0 %v835
    %v846 = vpop.f32.mrf.mxu0
    %v847 = vadd.f32 %v164, %v846
    %v848 = vpop.f32.mrf.mxu0
    %849 = vdwg.mxu0
    %850 = vmatpush.bf16.msra.mxu0 %v424
    %851 = vmatpush.bf16.msra.mxu0 %v420
    %852 = vmatpush.bf16.msra.mxu0 %v416
    %853 = vmatpush.bf16.msra.mxu0 %v412
    %854 = vmatpush.bf16.msra.mxu0 %v408
    %855 = vmatpush.bf16.msra.mxu0 %v404
    %856 = vmatpush.bf16.msra.mxu0 %v400
    %857 = vmatpush.bf16.msra.mxu0 %v396
    %858 = vmatmul.bf16.gmra.mxu0 %v836
    %v859 = vpop.f32.mrf.mxu0
    %v860 = vadd.f32 %v847, %v859
    %v861 = vpop.f32.mrf.mxu0
    %862 = vdwg.mxu0
    %863 = vmatpush.bf16.msra.mxu0 %v393
    %864 = vmatpush.bf16.msra.mxu0 %v389
    %865 = vmatpush.bf16.msra.mxu0 %v385
    %866 = vmatpush.bf16.msra.mxu0 %v381
    %867 = vmatpush.bf16.msra.mxu0 %v377
    %868 = vmatpush.bf16.msra.mxu0 %v373
    %869 = vmatpush.bf16.msra.mxu0 %v369
    %870 = vmatpush.bf16.msra.mxu0 %v365
    %871 = vmatmul.bf16.gmra.mxu0 %v835
    %v872 = vpop.f32.mrf.mxu0
    %v873 = vadd.f32 %v165, %v872
    %v874 = vpop.f32.mrf.mxu0
    %875 = vdwg.mxu0
    %876 = vmatpush.bf16.msra.mxu0 %v425
    %877 = vmatpush.bf16.msra.mxu0 %v421
    %878 = vmatpush.bf16.msra.mxu0 %v417
    %879 = vmatpush.bf16.msra.mxu0 %v413
    %880 = vmatpush.bf16.msra.mxu0 %v409
    %881 = vmatpush.bf16.msra.mxu0 %v405
    %882 = vmatpush.bf16.msra.mxu0 %v401
    %883 = vmatpush.bf16.msra.mxu0 %v397
    %884 = vmatmul.bf16.gmra.mxu0 %v836
    %v885 = vpop.f32.mrf.mxu0
    %v886 = vadd.f32 %v873, %v885
    %v887 = vpop.f32.mrf.mxu0
    %888 = vdwg.mxu0
    %889 = vmatpush.bf16.msra.mxu0 %v394
    %890 = vmatpush.bf16.msra.mxu0 %v390
    %891 = vmatpush.bf16.msra.mxu0 %v386
    %892 = vmatpush.bf16.msra.mxu0 %v382
    %893 = vmatpush.bf16.msra.mxu0 %v378
    %894 = vmatpush.bf16.msra.mxu0 %v374
    %895 = vmatpush.bf16.msra.mxu0 %v370
    %896 = vmatpush.bf16.msra.mxu0 %v366
    %897 = vmatmul.bf16.gmra.mxu0 %v835
    %v898 = vpop.f32.mrf.mxu0
    %v899 = vadd.f32 %v166, %v898
    %v900 = vpop.f32.mrf.mxu0
    %901 = vdwg.mxu0
    %902 = vmatpush.bf16.msra.mxu0 %v426
    %903 = vmatpush.bf16.msra.mxu0 %v422
    %904 = vmatpush.bf16.msra.mxu0 %v418
    %905 = vmatpush.bf16.msra.mxu0 %v414
    %906 = vmatpush.bf16.msra.mxu0 %v410
    %907 = vmatpush.bf16.msra.mxu0 %v406
    %908 = vmatpush.bf16.msra.mxu0 %v402
    %909 = vmatpush.bf16.msra.mxu0 %v398
    %910 = vmatmul.bf16.gmra.mxu0 %v836
    %v911 = vpop.f32.mrf.mxu0
    %v912 = vadd.f32 %v899, %v911
    %v913 = vpop.f32.mrf.mxu0
    %914 = vdwg.mxu0
    %915 = vmatpush.bf16.msra.mxu0 %v395
    %916 = vmatpush.bf16.msra.mxu0 %v391
    %917 = vmatpush.bf16.msra.mxu0 %v387
    %918 = vmatpush.bf16.msra.mxu0 %v383
    %919 = vmatpush.bf16.msra.mxu0 %v379
    %920 = vmatpush.bf16.msra.mxu0 %v375
    %921 = vmatpush.bf16.msra.mxu0 %v371
    %922 = vmatpush.bf16.msra.mxu0 %v367
    %923 = vmatmul.bf16.gmra.mxu0 %v835
    %v924 = vpop.f32.mrf.mxu0
    %v925 = vadd.f32 %v167, %v924
    %v926 = vpop.f32.mrf.mxu0
    %927 = vdwg.mxu0
    %928 = vmatpush.bf16.msra.mxu0 %v427
    %929 = vmatpush.bf16.msra.mxu0 %v423
    %930 = vmatpush.bf16.msra.mxu0 %v419
    %931 = vmatpush.bf16.msra.mxu0 %v415
    %932 = vmatpush.bf16.msra.mxu0 %v411
    %933 = vmatpush.bf16.msra.mxu0 %v407
    %934 = vmatpush.bf16.msra.mxu0 %v403
    %935 = vmatpush.bf16.msra.mxu0 %v399
    %936 = vmatmul.bf16.gmra.mxu0 %v836
    %v937 = vpop.f32.mrf.mxu0
    %v938 = vadd.f32 %v925, %v937
    %v939 = vpop.f32.mrf.mxu0
    %940 = vdwg.mxu0
    %v941 = vxor.u32 %v860, 2147483648
    %v942 = vmul.f32 %v941, 1.442695
    %v943 = vpow.pop %v942
    %v944 = vadd.f32 %v943, 1.0
    %v945 = vrcp.pop %v944
    %v946 = vmul.f32 %v944, %v945
    %v947 = vsub.f32 1.0, %v946
    %v948 = vmul.f32 %v945, %v947
    %v949 = vadd.f32 %v945, %v948
    %vm950 = vweird.f32 %v944
    %vm951 = vweird.f32 %v945
    %vm952 = vmor %vm950, %vm951
    %v953 = vsel %vm952, %v945, %v949
    %v954 = vand.u32 2147483647, %v944
    %vm955 = vcmp.eq.f32.partialorder %v954, 8.507059e+37
    %v956 = vand.u32 %v944, 2147483648
    %v957 = vor.u32 1.1754944e-38, %v956
    %v958 = vsel %vm955, %v957, %v953
    %v959 = vmul.f32 1.0, %v958
    %v960 = vxor.u32 %v886, 2147483648
    %v961 = vmul.f32 %v960, 1.442695
    %v962 = vpow.pop %v961
    %v963 = vadd.f32 %v962, 1.0
    %v964 = vrcp.pop %v963
    %v965 = vmul.f32 %v963, %v964
    %v966 = vsub.f32 1.0, %v965
    %v967 = vmul.f32 %v964, %v966
    %v968 = vadd.f32 %v964, %v967
    %vm969 = vweird.f32 %v963
    %vm970 = vweird.f32 %v964
    %vm971 = vmor %vm969, %vm970
    %v972 = vsel %vm971, %v964, %v968
    %v973 = vand.u32 2147483647, %v963
    %vm974 = vcmp.eq.f32.partialorder %v973, 8.507059e+37
    %v975 = vand.u32 %v963, 2147483648
    %v976 = vor.u32 1.1754944e-38, %v975
    %v977 = vsel %vm974, %v976, %v972
    %v978 = vmul.f32 1.0, %v977
    %v979 = vtanh.pop %v912
    %v980 = vxor.u32 %v938, 2147483648
    %v981 = vmul.f32 %v980, 1.442695
    %v982 = vpow.pop %v981
    %v983 = vadd.f32 %v982, 1.0
    %v984 = vrcp.pop %v983
    %v985 = vmul.f32 %v983, %v984
    %v986 = vsub.f32 1.0, %v985
    %v987 = vmul.f32 %v984, %v986
    %v988 = vadd.f32 %v984, %v987
    %vm989 = vweird.f32 %v983
    %vm990 = vweird.f32 %v984
    %vm991 = vmor %vm989, %vm990
    %v992 = vsel %vm991, %v984, %v988
    %v993 = vand.u32 2147483647, %v983
    %vm994 = vcmp.eq.f32.partialorder %v993, 8.507059e+37
    %v995 = vand.u32 %v983, 2147483648
    %v996 = vor.u32 1.1754944e-38, %v995
    %v997 = vsel %vm994, %v996, %v992
    %v998 = vmul.f32 1.0, %v997
    %v999 = vmul.f32 %v978, %v828
    %v1000 = vmul.f32 %v959, %v979
    %v1001 = vadd.f32 %v999, %v1000
    %v1002 = vtanh.pop %v1001
    %v1003 = vmul.f32 %v998, %v1002
    %s1004 = scalar_lea.vmem [#allocation11], 16
    %1005 = vst [vmem:[%s1004] sm:$0xff] %v1003
    %s1006 = scalar_lea.vmem [#allocation2], 24
    %v1007 = vld [vmem:[%s1006] sm:$0xff]
    %v1008 = vpack.c.bf16 %v1007, %v1007
    %v1009 = vpack.c.bf16 %v1003, %v1003
    %1010 = vmatpush.bf16.msra.mxu0 %v392
    %1011 = vmatpush.bf16.msra.mxu0 %v388
    %1012 = vmatpush.bf16.msra.mxu0 %v384
    %1013 = vmatpush.bf16.msra.mxu0 %v380
    %1014 = vmatpush.bf16.msra.mxu0 %v376
    %1015 = vmatpush.bf16.msra.mxu0 %v372
    %1016 = vmatpush.bf16.msra.mxu0 %v368
    %1017 = vmatpush.bf16.msra.mxu0 %v364
    %1018 = vmatmul.bf16.gmra.mxu0 %v1008
    %v1019 = vpop.f32.mrf.mxu0
    %v1020 = vadd.f32 %v164, %v1019
    %v1021 = vpop.f32.mrf.mxu0
    %1022 = vdwg.mxu0
    %1023 = vmatpush.bf16.msra.mxu0 %v424
    %1024 = vmatpush.bf16.msra.mxu0 %v420
    %1025 = vmatpush.bf16.msra.mxu0 %v416
    %1026 = vmatpush.bf16.msra.mxu0 %v412
    %1027 = vmatpush.bf16.msra.mxu0 %v408
    %1028 = vmatpush.bf16.msra.mxu0 %v404
    %1029 = vmatpush.bf16.msra.mxu0 %v400
    %1030 = vmatpush.bf16.msra.mxu0 %v396
    %1031 = vmatmul.bf16.gmra.mxu0 %v1009
    %v1032 = vpop.f32.mrf.mxu0
    %v1033 = vadd.f32 %v1020, %v1032
    %v1034 = vpop.f32.mrf.mxu0
    %1035 = vdwg.mxu0
    %1036 = vmatpush.bf16.msra.mxu0 %v393
    %1037 = vmatpush.bf16.msra.mxu0 %v389
    %1038 = vmatpush.bf16.msra.mxu0 %v385
    %1039 = vmatpush.bf16.msra.mxu0 %v381
    %1040 = vmatpush.bf16.msra.mxu0 %v377
    %1041 = vmatpush.bf16.msra.mxu0 %v373
    %1042 = vmatpush.bf16.msra.mxu0 %v369
    %1043 = vmatpush.bf16.msra.mxu0 %v365
    %1044 = vmatmul.bf16.gmra.mxu0 %v1008
    %v1045 = vpop.f32.mrf.mxu0
    %v1046 = vadd.f32 %v165, %v1045
    %v1047 = vpop.f32.mrf.mxu0
    %1048 = vdwg.mxu0
    %1049 = vmatpush.bf16.msra.mxu0 %v425
    %1050 = vmatpush.bf16.msra.mxu0 %v421
    %1051 = vmatpush.bf16.msra.mxu0 %v417
    %1052 = vmatpush.bf16.msra.mxu0 %v413
    %1053 = vmatpush.bf16.msra.mxu0 %v409
    %1054 = vmatpush.bf16.msra.mxu0 %v405
    %1055 = vmatpush.bf16.msra.mxu0 %v401
    %1056 = vmatpush.bf16.msra.mxu0 %v397
    %1057 = vmatmul.bf16.gmra.mxu0 %v1009
    %v1058 = vpop.f32.mrf.mxu0
    %v1059 = vadd.f32 %v1046, %v1058
    %v1060 = vpop.f32.mrf.mxu0
    %1061 = vdwg.mxu0
    %1062 = vmatpush.bf16.msra.mxu0 %v394
    %1063 = vmatpush.bf16.msra.mxu0 %v390
    %1064 = vmatpush.bf16.msra.mxu0 %v386
    %1065 = vmatpush.bf16.msra.mxu0 %v382
    %1066 = vmatpush.bf16.msra.mxu0 %v378
    %1067 = vmatpush.bf16.msra.mxu0 %v374
    %1068 = vmatpush.bf16.msra.mxu0 %v370
    %1069 = vmatpush.bf16.msra.mxu0 %v366
    %1070 = vmatmul.bf16.gmra.mxu0 %v1008
    %v1071 = vpop.f32.mrf.mxu0
    %v1072 = vadd.f32 %v166, %v1071
    %v1073 = vpop.f32.mrf.mxu0
    %1074 = vdwg.mxu0
    %1075 = vmatpush.bf16.msra.mxu0 %v426
    %1076 = vmatpush.bf16.msra.mxu0 %v422
    %1077 = vmatpush.bf16.msra.mxu0 %v418
    %1078 = vmatpush.bf16.msra.mxu0 %v414
    %1079 = vmatpush.bf16.msra.mxu0 %v410
    %1080 = vmatpush.bf16.msra.mxu0 %v406
    %1081 = vmatpush.bf16.msra.mxu0 %v402
    %1082 = vmatpush.bf16.msra.mxu0 %v398
    %1083 = vmatmul.bf16.gmra.mxu0 %v1009
    %v1084 = vpop.f32.mrf.mxu0
    %v1085 = vadd.f32 %v1072, %v1084
    %v1086 = vpop.f32.mrf.mxu0
    %1087 = vdwg.mxu0
    %1088 = vmatpush.bf16.msra.mxu0 %v395
    %1089 = vmatpush.bf16.msra.mxu0 %v391
    %1090 = vmatpush.bf16.msra.mxu0 %v387
    %1091 = vmatpush.bf16.msra.mxu0 %v383
    %1092 = vmatpush.bf16.msra.mxu0 %v379
    %1093 = vmatpush.bf16.msra.mxu0 %v375
    %1094 = vmatpush.bf16.msra.mxu0 %v371
    %1095 = vmatpush.bf16.msra.mxu0 %v367
    %1096 = vmatmul.bf16.gmra.mxu0 %v1008
    %v1097 = vpop.f32.mrf.mxu0
    %v1098 = vadd.f32 %v167, %v1097
    %v1099 = vpop.f32.mrf.mxu0
    %1100 = vdwg.mxu0
    %1101 = vmatpush.bf16.msra.mxu0 %v427
    %1102 = vmatpush.bf16.msra.mxu0 %v423
    %1103 = vmatpush.bf16.msra.mxu0 %v419
    %1104 = vmatpush.bf16.msra.mxu0 %v415
    %1105 = vmatpush.bf16.msra.mxu0 %v411
    %1106 = vmatpush.bf16.msra.mxu0 %v407
    %1107 = vmatpush.bf16.msra.mxu0 %v403
    %1108 = vmatpush.bf16.msra.mxu0 %v399
    %1109 = vmatmul.bf16.gmra.mxu0 %v1009
    %v1110 = vpop.f32.mrf.mxu0
    %v1111 = vadd.f32 %v1098, %v1110
    %v1112 = vpop.f32.mrf.mxu0
    %1113 = vdwg.mxu0
    %v1114 = vxor.u32 %v1033, 2147483648
    %v1115 = vmul.f32 %v1114, 1.442695
    %v1116 = vpow.pop %v1115
    %v1117 = vadd.f32 %v1116, 1.0
    %v1118 = vrcp.pop %v1117
    %v1119 = vmul.f32 %v1117, %v1118
    %v1120 = vsub.f32 1.0, %v1119
    %v1121 = vmul.f32 %v1118, %v1120
    %v1122 = vadd.f32 %v1118, %v1121
    %vm1123 = vweird.f32 %v1117
    %vm1124 = vweird.f32 %v1118
    %vm1125 = vmor %vm1123, %vm1124
    %v1126 = vsel %vm1125, %v1118, %v1122
    %v1127 = vand.u32 2147483647, %v1117
    %vm1128 = vcmp.eq.f32.partialorder %v1127, 8.507059e+37
    %v1129 = vand.u32 %v1117, 2147483648
    %v1130 = vor.u32 1.1754944e-38, %v1129
    %v1131 = vsel %vm1128, %v1130, %v1126
    %v1132 = vmul.f32 1.0, %v1131
    %v1133 = vxor.u32 %v1059, 2147483648
    %v1134 = vmul.f32 %v1133, 1.442695
    %v1135 = vpow.pop %v1134
    %v1136 = vadd.f32 %v1135, 1.0
    %v1137 = vrcp.pop %v1136
    %v1138 = vmul.f32 %v1136, %v1137
    %v1139 = vsub.f32 1.0, %v1138
    %v1140 = vmul.f32 %v1137, %v1139
    %v1141 = vadd.f32 %v1137, %v1140
    %vm1142 = vweird.f32 %v1136
    %vm1143 = vweird.f32 %v1137
    %vm1144 = vmor %vm1142, %vm1143
    %v1145 = vsel %vm1144, %v1137, %v1141
    %v1146 = vand.u32 2147483647, %v1136
    %vm1147 = vcmp.eq.f32.partialorder %v1146, 8.507059e+37
    %v1148 = vand.u32 %v1136, 2147483648
    %v1149 = vor.u32 1.1754944e-38, %v1148
    %v1150 = vsel %vm1147, %v1149, %v1145
    %v1151 = vmul.f32 1.0, %v1150
    %v1152 = vtanh.pop %v1085
    %v1153 = vxor.u32 %v1111, 2147483648
    %v1154 = vmul.f32 %v1153, 1.442695
    %v1155 = vpow.pop %v1154
    %v1156 = vadd.f32 %v1155, 1.0
    %v1157 = vrcp.pop %v1156
    %v1158 = vmul.f32 %v1156, %v1157
    %v1159 = vsub.f32 1.0, %v1158
    %v1160 = vmul.f32 %v1157, %v1159
    %v1161 = vadd.f32 %v1157, %v1160
    %vm1162 = vweird.f32 %v1156
    %vm1163 = vweird.f32 %v1157
    %vm1164 = vmor %vm1162, %vm1163
    %v1165 = vsel %vm1164, %v1157, %v1161
    %v1166 = vand.u32 2147483647, %v1156
    %vm1167 = vcmp.eq.f32.partialorder %v1166, 8.507059e+37
    %v1168 = vand.u32 %v1156, 2147483648
    %v1169 = vor.u32 1.1754944e-38, %v1168
    %v1170 = vsel %vm1167, %v1169, %v1165
    %v1171 = vmul.f32 1.0, %v1170
    %v1172 = vmul.f32 %v1151, %v1001
    %v1173 = vmul.f32 %v1132, %v1152
    %v1174 = vadd.f32 %v1172, %v1173
    %v1175 = vtanh.pop %v1174
    %v1176 = vmul.f32 %v1171, %v1175
    %s1177 = scalar_lea.vmem [#allocation11], 24
    %1178 = vst [vmem:[%s1177] sm:$0xff] %v1176
    %s1179 = scalar_lea.vmem [#allocation2], 32
    %v1180 = vld [vmem:[%s1179] sm:$0xff]
    %v1181 = vpack.c.bf16 %v1180, %v1180
    %v1182 = vpack.c.bf16 %v1176, %v1176
    %1183 = vmatpush.bf16.msra.mxu0 %v392
    %1184 = vmatpush.bf16.msra.mxu0 %v388
    %1185 = vmatpush.bf16.msra.mxu0 %v384
    %1186 = vmatpush.bf16.msra.mxu0 %v380
    %1187 = vmatpush.bf16.msra.mxu0 %v376
    %1188 = vmatpush.bf16.msra.mxu0 %v372
    %1189 = vmatpush.bf16.msra.mxu0 %v368
    %1190 = vmatpush.bf16.msra.mxu0 %v364
    %1191 = vmatmul.bf16.gmra.mxu0 %v1181
    %v1192 = vpop.f32.mrf.mxu0
    %v1193 = vadd.f32 %v164, %v1192
    %v1194 = vpop.f32.mrf.mxu0
    %1195 = vdwg.mxu0
    %1196 = vmatpush.bf16.msra.mxu0 %v424
    %1197 = vmatpush.bf16.msra.mxu0 %v420
    %1198 = vmatpush.bf16.msra.mxu0 %v416
    %1199 = vmatpush.bf16.msra.mxu0 %v412
    %1200 = vmatpush.bf16.msra.mxu0 %v408
    %1201 = vmatpush.bf16.msra.mxu0 %v404
    %1202 = vmatpush.bf16.msra.mxu0 %v400
    %1203 = vmatpush.bf16.msra.mxu0 %v396
    %1204 = vmatmul.bf16.gmra.mxu0 %v1182
    %v1205 = vpop.f32.mrf.mxu0
    %v1206 = vadd.f32 %v1193, %v1205
    %v1207 = vpop.f32.mrf.mxu0
    %1208 = vdwg.mxu0
    %1209 = vmatpush.bf16.msra.mxu0 %v393
    %1210 = vmatpush.bf16.msra.mxu0 %v389
    %1211 = vmatpush.bf16.msra.mxu0 %v385
    %1212 = vmatpush.bf16.msra.mxu0 %v381
    %1213 = vmatpush.bf16.msra.mxu0 %v377
    %1214 = vmatpush.bf16.msra.mxu0 %v373
    %1215 = vmatpush.bf16.msra.mxu0 %v369
    %1216 = vmatpush.bf16.msra.mxu0 %v365
    %1217 = vmatmul.bf16.gmra.mxu0 %v1181
    %v1218 = vpop.f32.mrf.mxu0
    %v1219 = vadd.f32 %v165, %v1218
    %v1220 = vpop.f32.mrf.mxu0
    %1221 = vdwg.mxu0
    %1222 = vmatpush.bf16.msra.mxu0 %v425
    %1223 = vmatpush.bf16.msra.mxu0 %v421
    %1224 = vmatpush.bf16.msra.mxu0 %v417
    %1225 = vmatpush.bf16.msra.mxu0 %v413
    %1226 = vmatpush.bf16.msra.mxu0 %v409
    %1227 = vmatpush.bf16.msra.mxu0 %v405
    %1228 = vmatpush.bf16.msra.mxu0 %v401
    %1229 = vmatpush.bf16.msra.mxu0 %v397
    %1230 = vmatmul.bf16.gmra.mxu0 %v1182
    %v1231 = vpop.f32.mrf.mxu0
    %v1232 = vadd.f32 %v1219, %v1231
    %v1233 = vpop.f32.mrf.mxu0
    %1234 = vdwg.mxu0
    %1235 = vmatpush.bf16.msra.mxu0 %v394
    %1236 = vmatpush.bf16.msra.mxu0 %v390
    %1237 = vmatpush.bf16.msra.mxu0 %v386
    %1238 = vmatpush.bf16.msra.mxu0 %v382
    %1239 = vmatpush.bf16.msra.mxu0 %v378
    %1240 = vmatpush.bf16.msra.mxu0 %v374
    %1241 = vmatpush.bf16.msra.mxu0 %v370
    %1242 = vmatpush.bf16.msra.mxu0 %v366
    %1243 = vmatmul.bf16.gmra.mxu0 %v1181
    %v1244 = vpop.f32.mrf.mxu0
    %v1245 = vadd.f32 %v166, %v1244
    %v1246 = vpop.f32.mrf.mxu0
    %1247 = vdwg.mxu0
    %1248 = vmatpush.bf16.msra.mxu0 %v426
    %1249 = vmatpush.bf16.msra.mxu0 %v422
    %1250 = vmatpush.bf16.msra.mxu0 %v418
    %1251 = vmatpush.bf16.msra.mxu0 %v414
    %1252 = vmatpush.bf16.msra.mxu0 %v410
    %1253 = vmatpush.bf16.msra.mxu0 %v406
    %1254 = vmatpush.bf16.msra.mxu0 %v402
    %1255 = vmatpush.bf16.msra.mxu0 %v398
    %1256 = vmatmul.bf16.gmra.mxu0 %v1182
    %v1257 = vpop.f32.mrf.mxu0
    %v1258 = vadd.f32 %v1245, %v1257
    %v1259 = vpop.f32.mrf.mxu0
    %1260 = vdwg.mxu0
    %1261 = vmatpush.bf16.msra.mxu0 %v395
    %1262 = vmatpush.bf16.msra.mxu0 %v391
    %1263 = vmatpush.bf16.msra.mxu0 %v387
    %1264 = vmatpush.bf16.msra.mxu0 %v383
    %1265 = vmatpush.bf16.msra.mxu0 %v379
    %1266 = vmatpush.bf16.msra.mxu0 %v375
    %1267 = vmatpush.bf16.msra.mxu0 %v371
    %1268 = vmatpush.bf16.msra.mxu0 %v367
    %1269 = vmatmul.bf16.gmra.mxu0 %v1181
    %v1270 = vpop.f32.mrf.mxu0
    %v1271 = vadd.f32 %v167, %v1270
    %v1272 = vpop.f32.mrf.mxu0
    %1273 = vdwg.mxu0
    %1274 = vmatpush.bf16.msra.mxu0 %v427
    %1275 = vmatpush.bf16.msra.mxu0 %v423
    %1276 = vmatpush.bf16.msra.mxu0 %v419
    %1277 = vmatpush.bf16.msra.mxu0 %v415
    %1278 = vmatpush.bf16.msra.mxu0 %v411
    %1279 = vmatpush.bf16.msra.mxu0 %v407
    %1280 = vmatpush.bf16.msra.mxu0 %v403
    %1281 = vmatpush.bf16.msra.mxu0 %v399
    %1282 = vmatmul.bf16.gmra.mxu0 %v1182
    %v1283 = vpop.f32.mrf.mxu0
    %v1284 = vadd.f32 %v1271, %v1283
    %v1285 = vpop.f32.mrf.mxu0
    %1286 = vdwg.mxu0
    %v1287 = vxor.u32 %v1206, 2147483648
    %v1288 = vmul.f32 %v1287, 1.442695
    %v1289 = vpow.pop %v1288
    %v1290 = vadd.f32 %v1289, 1.0
    %v1291 = vrcp.pop %v1290
    %v1292 = vmul.f32 %v1290, %v1291
    %v1293 = vsub.f32 1.0, %v1292
    %v1294 = vmul.f32 %v1291, %v1293
    %v1295 = vadd.f32 %v1291, %v1294
    %vm1296 = vweird.f32 %v1290
    %vm1297 = vweird.f32 %v1291
    %vm1298 = vmor %vm1296, %vm1297
    %v1299 = vsel %vm1298, %v1291, %v1295
    %v1300 = vand.u32 2147483647, %v1290
    %vm1301 = vcmp.eq.f32.partialorder %v1300, 8.507059e+37
    %v1302 = vand.u32 %v1290, 2147483648
    %v1303 = vor.u32 1.1754944e-38, %v1302
    %v1304 = vsel %vm1301, %v1303, %v1299
    %v1305 = vmul.f32 1.0, %v1304
    %v1306 = vxor.u32 %v1232, 2147483648
    %v1307 = vmul.f32 %v1306, 1.442695
    %v1308 = vpow.pop %v1307
    %v1309 = vadd.f32 %v1308, 1.0
    %v1310 = vrcp.pop %v1309
    %v1311 = vmul.f32 %v1309, %v1310
    %v1312 = vsub.f32 1.0, %v1311
    %v1313 = vmul.f32 %v1310, %v1312
    %v1314 = vadd.f32 %v1310, %v1313
    %vm1315 = vweird.f32 %v1309
    %vm1316 = vweird.f32 %v1310
    %vm1317 = vmor %vm1315, %vm1316
    %v1318 = vsel %vm1317, %v1310, %v1314
    %v1319 = vand.u32 2147483647, %v1309
    %vm1320 = vcmp.eq.f32.partialorder %v1319, 8.507059e+37
    %v1321 = vand.u32 %v1309, 2147483648
    %v1322 = vor.u32 1.1754944e-38, %v1321
    %v1323 = vsel %vm1320, %v1322, %v1318
    %v1324 = vmul.f32 1.0, %v1323
    %v1325 = vtanh.pop %v1258
    %v1326 = vxor.u32 %v1284, 2147483648
    %v1327 = vmul.f32 %v1326, 1.442695
    %v1328 = vpow.pop %v1327
    %v1329 = vadd.f32 %v1328, 1.0
    %v1330 = vrcp.pop %v1329
    %v1331 = vmul.f32 %v1329, %v1330
    %v1332 = vsub.f32 1.0, %v1331
    %v1333 = vmul.f32 %v1330, %v1332
    %v1334 = vadd.f32 %v1330, %v1333
    %vm1335 = vweird.f32 %v1329
    %vm1336 = vweird.f32 %v1330
    %vm1337 = vmor %vm1335, %vm1336
    %v1338 = vsel %vm1337, %v1330, %v1334
    %v1339 = vand.u32 2147483647, %v1329
    %vm1340 = vcmp.eq.f32.partialorder %v1339, 8.507059e+37
    %v1341 = vand.u32 %v1329, 2147483648
    %v1342 = vor.u32 1.1754944e-38, %v1341
    %v1343 = vsel %vm1340, %v1342, %v1338
    %v1344 = vmul.f32 1.0, %v1343
    %v1345 = vmul.f32 %v1324, %v1174
    %v1346 = vmul.f32 %v1305, %v1325
    %v1347 = vadd.f32 %v1345, %v1346
    %v1348 = vtanh.pop %v1347
    %v1349 = vmul.f32 %v1344, %v1348
    %s1350 = scalar_lea.vmem [#allocation11], 32
    %1351 = vst [vmem:[%s1350] sm:$0xff] %v1349
    %s1352 = scalar_lea.vmem [#allocation2], 40
    %v1353 = vld [vmem:[%s1352] sm:$0xff]
    %v1354 = vpack.c.bf16 %v1353, %v1353
    %v1355 = vpack.c.bf16 %v1349, %v1349
    %1356 = vmatpush.bf16.msra.mxu0 %v392
    %1357 = vmatpush.bf16.msra.mxu0 %v388
    %1358 = vmatpush.bf16.msra.mxu0 %v384
    %1359 = vmatpush.bf16.msra.mxu0 %v380
    %1360 = vmatpush.bf16.msra.mxu0 %v376
    %1361 = vmatpush.bf16.msra.mxu0 %v372
    %1362 = vmatpush.bf16.msra.mxu0 %v368
    %1363 = vmatpush.bf16.msra.mxu0 %v364
    %1364 = vmatmul.bf16.gmra.mxu0 %v1354
    %v1365 = vpop.f32.mrf.mxu0
    %v1366 = vadd.f32 %v164, %v1365
    %v1367 = vpop.f32.mrf.mxu0
    %1368 = vdwg.mxu0
    %1369 = vmatpush.bf16.msra.mxu0 %v424
    %1370 = vmatpush.bf16.msra.mxu0 %v420
    %1371 = vmatpush.bf16.msra.mxu0 %v416
    %1372 = vmatpush.bf16.msra.mxu0 %v412
    %1373 = vmatpush.bf16.msra.mxu0 %v408
    %1374 = vmatpush.bf16.msra.mxu0 %v404
    %1375 = vmatpush.bf16.msra.mxu0 %v400
    %1376 = vmatpush.bf16.msra.mxu0 %v396
    %1377 = vmatmul.bf16.gmra.mxu0 %v1355
    %v1378 = vpop.f32.mrf.mxu0
    %v1379 = vadd.f32 %v1366, %v1378
    %v1380 = vpop.f32.mrf.mxu0
    %1381 = vdwg.mxu0
    %1382 = vmatpush.bf16.msra.mxu0 %v393
    %1383 = vmatpush.bf16.msra.mxu0 %v389
    %1384 = vmatpush.bf16.msra.mxu0 %v385
    %1385 = vmatpush.bf16.msra.mxu0 %v381
    %1386 = vmatpush.bf16.msra.mxu0 %v377
    %1387 = vmatpush.bf16.msra.mxu0 %v373
    %1388 = vmatpush.bf16.msra.mxu0 %v369
    %1389 = vmatpush.bf16.msra.mxu0 %v365
    %1390 = vmatmul.bf16.gmra.mxu0 %v1354
    %v1391 = vpop.f32.mrf.mxu0
    %v1392 = vadd.f32 %v165, %v1391
    %v1393 = vpop.f32.mrf.mxu0
    %1394 = vdwg.mxu0
    %1395 = vmatpush.bf16.msra.mxu0 %v425
    %1396 = vmatpush.bf16.msra.mxu0 %v421
    %1397 = vmatpush.bf16.msra.mxu0 %v417
    %1398 = vmatpush.bf16.msra.mxu0 %v413
    %1399 = vmatpush.bf16.msra.mxu0 %v409
    %1400 = vmatpush.bf16.msra.mxu0 %v405
    %1401 = vmatpush.bf16.msra.mxu0 %v401
    %1402 = vmatpush.bf16.msra.mxu0 %v397
    %1403 = vmatmul.bf16.gmra.mxu0 %v1355
    %v1404 = vpop.f32.mrf.mxu0
    %v1405 = vadd.f32 %v1392, %v1404
    %v1406 = vpop.f32.mrf.mxu0
    %1407 = vdwg.mxu0
    %1408 = vmatpush.bf16.msra.mxu0 %v394
    %1409 = vmatpush.bf16.msra.mxu0 %v390
    %1410 = vmatpush.bf16.msra.mxu0 %v386
    %1411 = vmatpush.bf16.msra.mxu0 %v382
    %1412 = vmatpush.bf16.msra.mxu0 %v378
    %1413 = vmatpush.bf16.msra.mxu0 %v374
    %1414 = vmatpush.bf16.msra.mxu0 %v370
    %1415 = vmatpush.bf16.msra.mxu0 %v366
    %1416 = vmatmul.bf16.gmra.mxu0 %v1354
    %v1417 = vpop.f32.mrf.mxu0
    %v1418 = vadd.f32 %v166, %v1417
    %v1419 = vpop.f32.mrf.mxu0
    %1420 = vdwg.mxu0
    %1421 = vmatpush.bf16.msra.mxu0 %v426
    %1422 = vmatpush.bf16.msra.mxu0 %v422
    %1423 = vmatpush.bf16.msra.mxu0 %v418
    %1424 = vmatpush.bf16.msra.mxu0 %v414
    %1425 = vmatpush.bf16.msra.mxu0 %v410
    %1426 = vmatpush.bf16.msra.mxu0 %v406
    %1427 = vmatpush.bf16.msra.mxu0 %v402
    %1428 = vmatpush.bf16.msra.mxu0 %v398
    %1429 = vmatmul.bf16.gmra.mxu0 %v1355
    %v1430 = vpop.f32.mrf.mxu0
    %v1431 = vadd.f32 %v1418, %v1430
    %v1432 = vpop.f32.mrf.mxu0
    %1433 = vdwg.mxu0
    %1434 = vmatpush.bf16.msra.mxu0 %v395
    %1435 = vmatpush.bf16.msra.mxu0 %v391
    %1436 = vmatpush.bf16.msra.mxu0 %v387
    %1437 = vmatpush.bf16.msra.mxu0 %v383
    %1438 = vmatpush.bf16.msra.mxu0 %v379
    %1439 = vmatpush.bf16.msra.mxu0 %v375
    %1440 = vmatpush.bf16.msra.mxu0 %v371
    %1441 = vmatpush.bf16.msra.mxu0 %v367
    %1442 = vmatmul.bf16.gmra.mxu0 %v1354
    %v1443 = vpop.f32.mrf.mxu0
    %v1444 = vadd.f32 %v167, %v1443
    %v1445 = vpop.f32.mrf.mxu0
    %1446 = vdwg.mxu0
    %1447 = vmatpush.bf16.msra.mxu0 %v427
    %1448 = vmatpush.bf16.msra.mxu0 %v423
    %1449 = vmatpush.bf16.msra.mxu0 %v419
    %1450 = vmatpush.bf16.msra.mxu0 %v415
    %1451 = vmatpush.bf16.msra.mxu0 %v411
    %1452 = vmatpush.bf16.msra.mxu0 %v407
    %1453 = vmatpush.bf16.msra.mxu0 %v403
    %1454 = vmatpush.bf16.msra.mxu0 %v399
    %1455 = vmatmul.bf16.gmra.mxu0 %v1355
    %v1456 = vpop.f32.mrf.mxu0
    %v1457 = vadd.f32 %v1444, %v1456
    %v1458 = vpop.f32.mrf.mxu0
    %1459 = vdwg.mxu0
    %v1460 = vxor.u32 %v1379, 2147483648
    %v1461 = vmul.f32 %v1460, 1.442695
    %v1462 = vpow.pop %v1461
    %v1463 = vadd.f32 %v1462, 1.0
    %v1464 = vrcp.pop %v1463
    %v1465 = vmul.f32 %v1463, %v1464
    %v1466 = vsub.f32 1.0, %v1465
    %v1467 = vmul.f32 %v1464, %v1466
    %v1468 = vadd.f32 %v1464, %v1467
    %vm1469 = vweird.f32 %v1463
    %vm1470 = vweird.f32 %v1464
    %vm1471 = vmor %vm1469, %vm1470
    %v1472 = vsel %vm1471, %v1464, %v1468
    %v1473 = vand.u32 2147483647, %v1463
    %vm1474 = vcmp.eq.f32.partialorder %v1473, 8.507059e+37
    %v1475 = vand.u32 %v1463, 2147483648
    %v1476 = vor.u32 1.1754944e-38, %v1475
    %v1477 = vsel %vm1474, %v1476, %v1472
    %v1478 = vmul.f32 1.0, %v1477
    %v1479 = vxor.u32 %v1405, 2147483648
    %v1480 = vmul.f32 %v1479, 1.442695
    %v1481 = vpow.pop %v1480
    %v1482 = vadd.f32 %v1481, 1.0
    %v1483 = vrcp.pop %v1482
    %v1484 = vmul.f32 %v1482, %v1483
    %v1485 = vsub.f32 1.0, %v1484
    %v1486 = vmul.f32 %v1483, %v1485
    %v1487 = vadd.f32 %v1483, %v1486
    %vm1488 = vweird.f32 %v1482
    %vm1489 = vweird.f32 %v1483
    %vm1490 = vmor %vm1488, %vm1489
    %v1491 = vsel %vm1490, %v1483, %v1487
    %v1492 = vand.u32 2147483647, %v1482
    %vm1493 = vcmp.eq.f32.partialorder %v1492, 8.507059e+37
    %v1494 = vand.u32 %v1482, 2147483648
    %v1495 = vor.u32 1.1754944e-38, %v1494
    %v1496 = vsel %vm1493, %v1495, %v1491
    %v1497 = vmul.f32 1.0, %v1496
    %v1498 = vtanh.pop %v1431
    %v1499 = vxor.u32 %v1457, 2147483648
    %v1500 = vmul.f32 %v1499, 1.442695
    %v1501 = vpow.pop %v1500
    %v1502 = vadd.f32 %v1501, 1.0
    %v1503 = vrcp.pop %v1502
    %v1504 = vmul.f32 %v1502, %v1503
    %v1505 = vsub.f32 1.0, %v1504
    %v1506 = vmul.f32 %v1503, %v1505
    %v1507 = vadd.f32 %v1503, %v1506
    %vm1508 = vweird.f32 %v1502
    %vm1509 = vweird.f32 %v1503
    %vm1510 = vmor %vm1508, %vm1509
    %v1511 = vsel %vm1510, %v1503, %v1507
    %v1512 = vand.u32 2147483647, %v1502
    %vm1513 = vcmp.eq.f32.partialorder %v1512, 8.507059e+37
    %v1514 = vand.u32 %v1502, 2147483648
    %v1515 = vor.u32 1.1754944e-38, %v1514
    %v1516 = vsel %vm1513, %v1515, %v1511
    %v1517 = vmul.f32 1.0, %v1516
    %v1518 = vmul.f32 %v1497, %v1347
    %v1519 = vmul.f32 %v1478, %v1498
    %v1520 = vadd.f32 %v1518, %v1519
    %v1521 = vtanh.pop %v1520
    %v1522 = vmul.f32 %v1517, %v1521
    %s1523 = scalar_lea.vmem [#allocation11], 40
    %1524 = vst [vmem:[%s1523] sm:$0xff] %v1522
    %s1525 = scalar_lea.vmem [#allocation2], 48
    %v1526 = vld [vmem:[%s1525] sm:$0xff]
    %v1527 = vpack.c.bf16 %v1526, %v1526
    %v1528 = vpack.c.bf16 %v1522, %v1522
    %1529 = vmatpush.bf16.msra.mxu0 %v392
    %1530 = vmatpush.bf16.msra.mxu0 %v388
    %1531 = vmatpush.bf16.msra.mxu0 %v384
    %1532 = vmatpush.bf16.msra.mxu0 %v380
    %1533 = vmatpush.bf16.msra.mxu0 %v376
    %1534 = vmatpush.bf16.msra.mxu0 %v372
    %1535 = vmatpush.bf16.msra.mxu0 %v368
    %1536 = vmatpush.bf16.msra.mxu0 %v364
    %1537 = vmatmul.bf16.gmra.mxu0 %v1527
    %v1538 = vpop.f32.mrf.mxu0
    %v1539 = vadd.f32 %v164, %v1538
    %v1540 = vpop.f32.mrf.mxu0
    %1541 = vdwg.mxu0
    %1542 = vmatpush.bf16.msra.mxu0 %v424
    %1543 = vmatpush.bf16.msra.mxu0 %v420
    %1544 = vmatpush.bf16.msra.mxu0 %v416
    %1545 = vmatpush.bf16.msra.mxu0 %v412
    %1546 = vmatpush.bf16.msra.mxu0 %v408
    %1547 = vmatpush.bf16.msra.mxu0 %v404
    %1548 = vmatpush.bf16.msra.mxu0 %v400
    %1549 = vmatpush.bf16.msra.mxu0 %v396
    %1550 = vmatmul.bf16.gmra.mxu0 %v1528
    %v1551 = vpop.f32.mrf.mxu0
    %v1552 = vadd.f32 %v1539, %v1551
    %v1553 = vpop.f32.mrf.mxu0
    %1554 = vdwg.mxu0
    %1555 = vmatpush.bf16.msra.mxu0 %v393
    %1556 = vmatpush.bf16.msra.mxu0 %v389
    %1557 = vmatpush.bf16.msra.mxu0 %v385
    %1558 = vmatpush.bf16.msra.mxu0 %v381
    %1559 = vmatpush.bf16.msra.mxu0 %v377
    %1560 = vmatpush.bf16.msra.mxu0 %v373
    %1561 = vmatpush.bf16.msra.mxu0 %v369
    %1562 = vmatpush.bf16.msra.mxu0 %v365
    %1563 = vmatmul.bf16.gmra.mxu0 %v1527
    %v1564 = vpop.f32.mrf.mxu0
    %v1565 = vadd.f32 %v165, %v1564
    %v1566 = vpop.f32.mrf.mxu0
    %1567 = vdwg.mxu0
    %1568 = vmatpush.bf16.msra.mxu0 %v425
    %1569 = vmatpush.bf16.msra.mxu0 %v421
    %1570 = vmatpush.bf16.msra.mxu0 %v417
    %1571 = vmatpush.bf16.msra.mxu0 %v413
    %1572 = vmatpush.bf16.msra.mxu0 %v409
    %1573 = vmatpush.bf16.msra.mxu0 %v405
    %1574 = vmatpush.bf16.msra.mxu0 %v401
    %1575 = vmatpush.bf16.msra.mxu0 %v397
    %1576 = vmatmul.bf16.gmra.mxu0 %v1528
    %v1577 = vpop.f32.mrf.mxu0
    %v1578 = vadd.f32 %v1565, %v1577
    %v1579 = vpop.f32.mrf.mxu0
    %1580 = vdwg.mxu0
    %1581 = vmatpush.bf16.msra.mxu0 %v394
    %1582 = vmatpush.bf16.msra.mxu0 %v390
    %1583 = vmatpush.bf16.msra.mxu0 %v386
    %1584 = vmatpush.bf16.msra.mxu0 %v382
    %1585 = vmatpush.bf16.msra.mxu0 %v378
    %1586 = vmatpush.bf16.msra.mxu0 %v374
    %1587 = vmatpush.bf16.msra.mxu0 %v370
    %1588 = vmatpush.bf16.msra.mxu0 %v366
    %1589 = vmatmul.bf16.gmra.mxu0 %v1527
    %v1590 = vpop.f32.mrf.mxu0
    %v1591 = vadd.f32 %v166, %v1590
    %v1592 = vpop.f32.mrf.mxu0
    %1593 = vdwg.mxu0
    %1594 = vmatpush.bf16.msra.mxu0 %v426
    %1595 = vmatpush.bf16.msra.mxu0 %v422
    %1596 = vmatpush.bf16.msra.mxu0 %v418
    %1597 = vmatpush.bf16.msra.mxu0 %v414
    %1598 = vmatpush.bf16.msra.mxu0 %v410
    %1599 = vmatpush.bf16.msra.mxu0 %v406
    %1600 = vmatpush.bf16.msra.mxu0 %v402
    %1601 = vmatpush.bf16.msra.mxu0 %v398
    %1602 = vmatmul.bf16.gmra.mxu0 %v1528
    %v1603 = vpop.f32.mrf.mxu0
    %v1604 = vadd.f32 %v1591, %v1603
    %v1605 = vpop.f32.mrf.mxu0
    %1606 = vdwg.mxu0
    %1607 = vmatpush.bf16.msra.mxu0 %v395
    %1608 = vmatpush.bf16.msra.mxu0 %v391
    %1609 = vmatpush.bf16.msra.mxu0 %v387
    %1610 = vmatpush.bf16.msra.mxu0 %v383
    %1611 = vmatpush.bf16.msra.mxu0 %v379
    %1612 = vmatpush.bf16.msra.mxu0 %v375
    %1613 = vmatpush.bf16.msra.mxu0 %v371
    %1614 = vmatpush.bf16.msra.mxu0 %v367
    %1615 = vmatmul.bf16.gmra.mxu0 %v1527
    %v1616 = vpop.f32.mrf.mxu0
    %v1617 = vadd.f32 %v167, %v1616
    %v1618 = vpop.f32.mrf.mxu0
    %1619 = vdwg.mxu0
    %1620 = vmatpush.bf16.msra.mxu0 %v427
    %1621 = vmatpush.bf16.msra.mxu0 %v423
    %1622 = vmatpush.bf16.msra.mxu0 %v419
    %1623 = vmatpush.bf16.msra.mxu0 %v415
    %1624 = vmatpush.bf16.msra.mxu0 %v411
    %1625 = vmatpush.bf16.msra.mxu0 %v407
    %1626 = vmatpush.bf16.msra.mxu0 %v403
    %1627 = vmatpush.bf16.msra.mxu0 %v399
    %1628 = vmatmul.bf16.gmra.mxu0 %v1528
    %v1629 = vpop.f32.mrf.mxu0
    %v1630 = vadd.f32 %v1617, %v1629
    %v1631 = vpop.f32.mrf.mxu0
    %1632 = vdwg.mxu0
    %v1633 = vxor.u32 %v1552, 2147483648
    %v1634 = vmul.f32 %v1633, 1.442695
    %v1635 = vpow.pop %v1634
    %v1636 = vadd.f32 %v1635, 1.0
    %v1637 = vrcp.pop %v1636
    %v1638 = vmul.f32 %v1636, %v1637
    %v1639 = vsub.f32 1.0, %v1638
    %v1640 = vmul.f32 %v1637, %v1639
    %v1641 = vadd.f32 %v1637, %v1640
    %vm1642 = vweird.f32 %v1636
    %vm1643 = vweird.f32 %v1637
    %vm1644 = vmor %vm1642, %vm1643
    %v1645 = vsel %vm1644, %v1637, %v1641
    %v1646 = vand.u32 2147483647, %v1636
    %vm1647 = vcmp.eq.f32.partialorder %v1646, 8.507059e+37
    %v1648 = vand.u32 %v1636, 2147483648
    %v1649 = vor.u32 1.1754944e-38, %v1648
    %v1650 = vsel %vm1647, %v1649, %v1645
    %v1651 = vmul.f32 1.0, %v1650
    %v1652 = vxor.u32 %v1578, 2147483648
    %v1653 = vmul.f32 %v1652, 1.442695
    %v1654 = vpow.pop %v1653
    %v1655 = vadd.f32 %v1654, 1.0
    %v1656 = vrcp.pop %v1655
    %v1657 = vmul.f32 %v1655, %v1656
    %v1658 = vsub.f32 1.0, %v1657
    %v1659 = vmul.f32 %v1656, %v1658
    %v1660 = vadd.f32 %v1656, %v1659
    %vm1661 = vweird.f32 %v1655
    %vm1662 = vweird.f32 %v1656
    %vm1663 = vmor %vm1661, %vm1662
    %v1664 = vsel %vm1663, %v1656, %v1660
    %v1665 = vand.u32 2147483647, %v1655
    %vm1666 = vcmp.eq.f32.partialorder %v1665, 8.507059e+37
    %v1667 = vand.u32 %v1655, 2147483648
    %v1668 = vor.u32 1.1754944e-38, %v1667
    %v1669 = vsel %vm1666, %v1668, %v1664
    %v1670 = vmul.f32 1.0, %v1669
    %v1671 = vtanh.pop %v1604
    %v1672 = vxor.u32 %v1630, 2147483648
    %v1673 = vmul.f32 %v1672, 1.442695
    %v1674 = vpow.pop %v1673
    %v1675 = vadd.f32 %v1674, 1.0
    %v1676 = vrcp.pop %v1675
    %v1677 = vmul.f32 %v1675, %v1676
    %v1678 = vsub.f32 1.0, %v1677
    %v1679 = vmul.f32 %v1676, %v1678
    %v1680 = vadd.f32 %v1676, %v1679
    %vm1681 = vweird.f32 %v1675
    %vm1682 = vweird.f32 %v1676
    %vm1683 = vmor %vm1681, %vm1682
    %v1684 = vsel %vm1683, %v1676, %v1680
    %v1685 = vand.u32 2147483647, %v1675
    %vm1686 = vcmp.eq.f32.partialorder %v1685, 8.507059e+37
    %v1687 = vand.u32 %v1675, 2147483648
    %v1688 = vor.u32 1.1754944e-38, %v1687
    %v1689 = vsel %vm1686, %v1688, %v1684
    %v1690 = vmul.f32 1.0, %v1689
    %v1691 = vmul.f32 %v1670, %v1520
    %v1692 = vmul.f32 %v1651, %v1671
    %v1693 = vadd.f32 %v1691, %v1692
    %v1694 = vtanh.pop %v1693
    %v1695 = vmul.f32 %v1690, %v1694
    %s1696 = scalar_lea.vmem [#allocation11], 48
    %1697 = vst [vmem:[%s1696] sm:$0xff] %v1695
    %s1698 = scalar_lea.vmem [#allocation2], 56
    %v1699 = vld [vmem:[%s1698] sm:$0xff]
    %v1700 = vpack.c.bf16 %v1699, %v1699
    %v1701 = vpack.c.bf16 %v1695, %v1695
    %1702 = vmatpush.bf16.msra.mxu0 %v392
    %1703 = vmatpush.bf16.msra.mxu0 %v388
    %1704 = vmatpush.bf16.msra.mxu0 %v384
    %1705 = vmatpush.bf16.msra.mxu0 %v380
    %1706 = vmatpush.bf16.msra.mxu0 %v376
    %1707 = vmatpush.bf16.msra.mxu0 %v372
    %1708 = vmatpush.bf16.msra.mxu0 %v368
    %1709 = vmatpush.bf16.msra.mxu0 %v364
    %1710 = vmatmul.bf16.gmra.mxu0 %v1700
    %v1711 = vpop.f32.mrf.mxu0
    %v1712 = vadd.f32 %v164, %v1711
    %v1713 = vpop.f32.mrf.mxu0
    %1714 = vdwg.mxu0
    %1715 = vmatpush.bf16.msra.mxu0 %v424
    %1716 = vmatpush.bf16.msra.mxu0 %v420
    %1717 = vmatpush.bf16.msra.mxu0 %v416
    %1718 = vmatpush.bf16.msra.mxu0 %v412
    %1719 = vmatpush.bf16.msra.mxu0 %v408
    %1720 = vmatpush.bf16.msra.mxu0 %v404
    %1721 = vmatpush.bf16.msra.mxu0 %v400
    %1722 = vmatpush.bf16.msra.mxu0 %v396
    %1723 = vmatmul.bf16.gmra.mxu0 %v1701
    %v1724 = vpop.f32.mrf.mxu0
    %v1725 = vadd.f32 %v1712, %v1724
    %v1726 = vpop.f32.mrf.mxu0
    %1727 = vdwg.mxu0
    %1728 = vmatpush.bf16.msra.mxu0 %v393
    %1729 = vmatpush.bf16.msra.mxu0 %v389
    %1730 = vmatpush.bf16.msra.mxu0 %v385
    %1731 = vmatpush.bf16.msra.mxu0 %v381
    %1732 = vmatpush.bf16.msra.mxu0 %v377
    %1733 = vmatpush.bf16.msra.mxu0 %v373
    %1734 = vmatpush.bf16.msra.mxu0 %v369
    %1735 = vmatpush.bf16.msra.mxu0 %v365
    %1736 = vmatmul.bf16.gmra.mxu0 %v1700
    %v1737 = vpop.f32.mrf.mxu0
    %v1738 = vadd.f32 %v165, %v1737
    %v1739 = vpop.f32.mrf.mxu0
    %1740 = vdwg.mxu0
    %1741 = vmatpush.bf16.msra.mxu0 %v425
    %1742 = vmatpush.bf16.msra.mxu0 %v421
    %1743 = vmatpush.bf16.msra.mxu0 %v417
    %1744 = vmatpush.bf16.msra.mxu0 %v413
    %1745 = vmatpush.bf16.msra.mxu0 %v409
    %1746 = vmatpush.bf16.msra.mxu0 %v405
    %1747 = vmatpush.bf16.msra.mxu0 %v401
    %1748 = vmatpush.bf16.msra.mxu0 %v397
    %1749 = vmatmul.bf16.gmra.mxu0 %v1701
    %v1750 = vpop.f32.mrf.mxu0
    %v1751 = vadd.f32 %v1738, %v1750
    %v1752 = vpop.f32.mrf.mxu0
    %1753 = vdwg.mxu0
    %1754 = vmatpush.bf16.msra.mxu0 %v394
    %1755 = vmatpush.bf16.msra.mxu0 %v390
    %1756 = vmatpush.bf16.msra.mxu0 %v386
    %1757 = vmatpush.bf16.msra.mxu0 %v382
    %1758 = vmatpush.bf16.msra.mxu0 %v378
    %1759 = vmatpush.bf16.msra.mxu0 %v374
    %1760 = vmatpush.bf16.msra.mxu0 %v370
    %1761 = vmatpush.bf16.msra.mxu0 %v366
    %1762 = vmatmul.bf16.gmra.mxu0 %v1700
    %v1763 = vpop.f32.mrf.mxu0
    %v1764 = vadd.f32 %v166, %v1763
    %v1765 = vpop.f32.mrf.mxu0
    %1766 = vdwg.mxu0
    %1767 = vmatpush.bf16.msra.mxu0 %v426
    %1768 = vmatpush.bf16.msra.mxu0 %v422
    %1769 = vmatpush.bf16.msra.mxu0 %v418
    %1770 = vmatpush.bf16.msra.mxu0 %v414
    %1771 = vmatpush.bf16.msra.mxu0 %v410
    %1772 = vmatpush.bf16.msra.mxu0 %v406
    %1773 = vmatpush.bf16.msra.mxu0 %v402
    %1774 = vmatpush.bf16.msra.mxu0 %v398
    %1775 = vmatmul.bf16.gmra.mxu0 %v1701
    %v1776 = vpop.f32.mrf.mxu0
    %v1777 = vadd.f32 %v1764, %v1776
    %v1778 = vpop.f32.mrf.mxu0
    %1779 = vdwg.mxu0
    %1780 = vmatpush.bf16.msra.mxu0 %v395
    %1781 = vmatpush.bf16.msra.mxu0 %v391
    %1782 = vmatpush.bf16.msra.mxu0 %v387
    %1783 = vmatpush.bf16.msra.mxu0 %v383
    %1784 = vmatpush.bf16.msra.mxu0 %v379
    %1785 = vmatpush.bf16.msra.mxu0 %v375
    %1786 = vmatpush.bf16.msra.mxu0 %v371
    %1787 = vmatpush.bf16.msra.mxu0 %v367
    %1788 = vmatmul.bf16.gmra.mxu0 %v1700
    %v1789 = vpop.f32.mrf.mxu0
    %v1790 = vadd.f32 %v167, %v1789
    %v1791 = vpop.f32.mrf.mxu0
    %1792 = vdwg.mxu0
    %1793 = vmatpush.bf16.msra.mxu0 %v427
    %1794 = vmatpush.bf16.msra.mxu0 %v423
    %1795 = vmatpush.bf16.msra.mxu0 %v419
    %1796 = vmatpush.bf16.msra.mxu0 %v415
    %1797 = vmatpush.bf16.msra.mxu0 %v411
    %1798 = vmatpush.bf16.msra.mxu0 %v407
    %1799 = vmatpush.bf16.msra.mxu0 %v403
    %1800 = vmatpush.bf16.msra.mxu0 %v399
    %1801 = vmatmul.bf16.gmra.mxu0 %v1701
    %v1802 = vpop.f32.mrf.mxu0
    %v1803 = vadd.f32 %v1790, %v1802
    %v1804 = vpop.f32.mrf.mxu0
    %1805 = vdwg.mxu0
    %v1806 = vxor.u32 %v1725, 2147483648
    %v1807 = vmul.f32 %v1806, 1.442695
    %v1808 = vpow.pop %v1807
    %v1809 = vadd.f32 %v1808, 1.0
    %v1810 = vrcp.pop %v1809
    %v1811 = vmul.f32 %v1809, %v1810
    %v1812 = vsub.f32 1.0, %v1811
    %v1813 = vmul.f32 %v1810, %v1812
    %v1814 = vadd.f32 %v1810, %v1813
    %vm1815 = vweird.f32 %v1809
    %vm1816 = vweird.f32 %v1810
    %vm1817 = vmor %vm1815, %vm1816
    %v1818 = vsel %vm1817, %v1810, %v1814
    %v1819 = vand.u32 2147483647, %v1809
    %vm1820 = vcmp.eq.f32.partialorder %v1819, 8.507059e+37
    %v1821 = vand.u32 %v1809, 2147483648
    %v1822 = vor.u32 1.1754944e-38, %v1821
    %v1823 = vsel %vm1820, %v1822, %v1818
    %v1824 = vmul.f32 1.0, %v1823
    %v1825 = vxor.u32 %v1751, 2147483648
    %v1826 = vmul.f32 %v1825, 1.442695
    %v1827 = vpow.pop %v1826
    %v1828 = vadd.f32 %v1827, 1.0
    %v1829 = vrcp.pop %v1828
    %v1830 = vmul.f32 %v1828, %v1829
    %v1831 = vsub.f32 1.0, %v1830
    %v1832 = vmul.f32 %v1829, %v1831
    %v1833 = vadd.f32 %v1829, %v1832
    %vm1834 = vweird.f32 %v1828
    %vm1835 = vweird.f32 %v1829
    %vm1836 = vmor %vm1834, %vm1835
    %v1837 = vsel %vm1836, %v1829, %v1833
    %v1838 = vand.u32 2147483647, %v1828
    %vm1839 = vcmp.eq.f32.partialorder %v1838, 8.507059e+37
    %v1840 = vand.u32 %v1828, 2147483648
    %v1841 = vor.u32 1.1754944e-38, %v1840
    %v1842 = vsel %vm1839, %v1841, %v1837
    %v1843 = vmul.f32 1.0, %v1842
    %v1844 = vtanh.pop %v1777
    %v1845 = vxor.u32 %v1803, 2147483648
    %v1846 = vmul.f32 %v1845, 1.442695
    %v1847 = vpow.pop %v1846
    %v1848 = vadd.f32 %v1847, 1.0
    %v1849 = vrcp.pop %v1848
    %v1850 = vmul.f32 %v1848, %v1849
    %v1851 = vsub.f32 1.0, %v1850
    %v1852 = vmul.f32 %v1849, %v1851
    %v1853 = vadd.f32 %v1849, %v1852
    %vm1854 = vweird.f32 %v1848
    %vm1855 = vweird.f32 %v1849
    %vm1856 = vmor %vm1854, %vm1855
    %v1857 = vsel %vm1856, %v1849, %v1853
    %v1858 = vand.u32 2147483647, %v1848
    %vm1859 = vcmp.eq.f32.partialorder %v1858, 8.507059e+37
    %v1860 = vand.u32 %v1848, 2147483648
    %v1861 = vor.u32 1.1754944e-38, %v1860
    %v1862 = vsel %vm1859, %v1861, %v1857
    %v1863 = vmul.f32 1.0, %v1862
    %v1864 = vmul.f32 %v1843, %v1693
    %v1865 = vmul.f32 %v1824, %v1844
    %v1866 = vadd.f32 %v1864, %v1865
    %v1867 = vtanh.pop %v1866
    %v1868 = vmul.f32 %v1863, %v1867
    %s1869 = scalar_lea.vmem [#allocation11], 56
    %1870 = vst [vmem:[%s1869] sm:$0xff] %v1868
    // Predicated region
    $region42: #{tpu_custom_call.1} parent=1 // pred_check
      _
    $region43: #{tpu_custom_call.1} parent=1 // pred_check_branch
      %1872 = sbr.rel (0) target = $region45
    $region44: #{tpu_custom_call.1} parent=1 // pred_region
      %1874 = vsyncadd [#allocation4], 0
      %s1875 = sshll.u32 [#allocation11], 4
      %s1876 = int_to_ptr.vmem [resolvable:$true] %s1875
      %s1877 = sshll.u32 %s5, 4
      %s1878 = int_to_ptr.hbm [resolvable:$true] %s1877
      %1883 = dma.vmem_to_hbm [thread:$0]  %s1876, 1024, %s1878, [#allocation4], 128, 128, 8
    $region45: #{tpu_custom_call.1} parent=1 // pred_fallthru
      _
    // Predicated region
    $region46: #{tpu_custom_call.1} parent=1 // pred_check
      _
    $region47: #{tpu_custom_call.1} parent=1 // pred_check_branch
      %1885 = sbr.rel (0) target = $region49
    $region48: #{tpu_custom_call.1} parent=1 // pred_region
      %1887 = dma.done [#allocation4], 1024
    $region49: #{tpu_custom_call.1} parent=1 // pred_fallthru
      _
    %1888 = vsyncpa [#allocation3], 1
    %1889 = vsyncpa [#allocation6], 1
    %1890 = vsyncpa [#allocation9], 1
    %1891 = vsyncpa [#allocation4], 1

</llo_original>
